<compile_context>
chip_gen: v6e
topology: v6e:2x2x1
jax: 0.10.0
libtpu: 0.0.40
codegen_flags: <defaults>
</compile_context>

<pallas_src>
import functools

import numpy as np
import jax
import jax.numpy as jnp
from jax.experimental import pallas as pl
from jax.experimental.pallas import tpu as pltpu

EPS = 1e-5
LANES = 128


def _conv_out(h):
    # Conv2d(kernel=1, stride=2, padding=1): floor((h + 2 - 1) / 2) + 1
    return (h + 1) // 2 + 1


def _model_kernel(x_ref, p_ref, g2_ref, out_ref, *, c, l1, l2):
    """Single gridless invocation; every operand is lane-dense (last dim = 128).

    x_ref  : (c, 128)   stage-1 spatially-sampled activation slab (pad columns are 0)
    p_ref  : (16, 128)  packed static params:
                rows 0..c-1 : [ conv weight (c x c) | bias (col c) | zeros ]
                row  c      : valid-column mask of stage 1 (l1 ones)
                row  c+1    : valid-column mask of stages 2/3 (l2 ones)
                row  c+2    : per-batch centre mask of the degenerate third conv
    g2_ref : (128, 128)  0/1 selection matrix (src col x dst col) of the stride-2/pad-1
                         sampling from stage 1 to stage 2 (zero rows/cols for padding)
    out_ref: (c, 128)    bn3(v5) + bn4(v4) in the first l2 columns
    """
    hp = jax.lax.Precision.HIGHEST
    x = x_ref[...]
    p = p_ref[...]

    wgt = p[:c, :c]                       # (c, c)
    bias = p[:c, c:c + 1]                 # (c, 1)
    valid1 = p[c:c + 1, :]                # (1, 128)
    valid2 = p[c + 1:c + 2, :]            # (1, 128)
    center = p[c + 2:c + 3, :]            # (1, 128)

    bias1 = bias * valid1                 # bias only on valid columns -> pads stay 0
    bias2 = bias * valid2

    def mm(a, b):
        # MXU matmul.  HIGHEST keeps the 0/1 selection matmul bit-exact and the MXU is
        # otherwise idle between the tiny 8x8 channel mixes, so the extra passes are free.
        return jnp.dot(a, b, preferred_element_type=jnp.float32, precision=hp)

    def bn_stats(v, count):
        # one-pass batch statistics over the `count` valid columns (pad columns must be 0)
        inv = 1.0 / count
        mean = jnp.sum(v, axis=-1, keepdims=True) * inv
        ex2 = jnp.sum(v * v, axis=-1, keepdims=True) * inv
        return mean, jax.lax.rsqrt(ex2 - mean * mean + EPS)

    # v1 = conv(x): the static spatial sampling was hoisted to the jitted wrapper, so
    # only the c x c channel mix + masked bias remains.
    v1 = mm(wgt, x) + bias1

    # v3 = conv(bn1(v1)): bn1 folded -> subtract the mean before the selection matmul,
    # scale the selected slab per channel.  Output columns that sample zero-padding get
    # exactly `bias`; pad columns stay 0.
    m1, s1 = bn_stats(v1, l1)
    v3 = mm(wgt, s1 * mm(v1 - m1, g2_ref[...])) + bias2

    # v4 = bn2(v3)  (explicit: feeds both the third conv and bn4)
    m2, s2 = bn_stats(v3, l2)
    v4 = (v3 - m2) * s2

    # v5 = conv(v4): stage 2 -> stage 3 is the spatial fixed point, so only the
    # per-batch centre column carries data; every other valid column is exactly bias.
    v5 = mm(wgt, v4 * center) + bias2

    # out = bn3(v5) + bn4(v4)   (v4's pad columns are nonzero -> mask its stats)
    m3, s3 = bn_stats(v5, l2)
    m4, s4 = bn_stats(v4 * valid2, l2)
    out_ref[...] = (v5 - m3) * s3 + (v4 - m4) * s4


def build_model_forward(w_oi, bias, *, n, h0, w0):
    """Packs all static operands once (numpy) and returns a single jitted forward(x)."""
    c = int(np.asarray(w_oi).shape[0])
    h1, w1 = _conv_out(h0), _conv_out(w0)
    h2, w2 = _conv_out(h1), _conv_out(w1)
    h3, w3 = _conv_out(h2), _conv_out(w2)
    # The forward is only shape-valid when conv(conv(conv(x))) matches conv(conv(x)).
    assert (h3, w3) == (h2, w2), "use an input spatial size such as 6"
    assert h0 % 2 == 0 and w0 % 2 == 0, "even input spatial size required"
    l1, l2 = n * h1 * w1, n * h2 * w2
    assert c <= 8 and l1 <= LANES and l2 <= LANES

    # ---------- static operands, built once (hoisted out of the per-call path) ----------
    p = np.zeros((16, LANES), np.float32)
    p[:c, :c] = np.asarray(w_oi, np.float32)
    p[:c, c] = np.asarray(bias, np.float32).reshape(c)
    p[c, :l1] = 1.0                                    # stage-1 valid columns
    p[c + 1, :l2] = 1.0                                # stage-2/3 valid columns
    for b in range(n):                                 # third-conv centre columns
        p[c + 2, b * h2 * w2 + w2 + 1] = 1.0

    g2 = np.zeros((LANES, LANES), np.float32)          # stage-1 -> stage-2 selection
    for b in range(n):
        for ho in range(h2):
            for wo in range(w2):
                hi, wi = 2 * ho - 1, 2 * wo - 1
                if 0 <= hi < h1 and 0 <= wi < w1:
                    g2[b * h1 * w1 + hi * w1 + wi, b * h2 * w2 + ho * w2 + wo] = 1.0

    p = jnp.asarray(p)
    g2 = jnp.asarray(g2)

    vmem = pl.BlockSpec(memory_space=pltpu.MemorySpace.VMEM)
    call = pl.pallas_call(
        functools.partial(_model_kernel, c=c, l1=l1, l2=l2),
        out_shape=jax.ShapeDtypeStruct((c, LANES), jnp.float32),
        in_specs=[vmem, vmem, vmem],
        out_specs=vmem,
    )

    @jax.jit
    def forward(x_nchw):
        # Layout + the fully static stride-2/pad-1 sampling of the FIRST conv: channel
        # major, spatially subsampled (out[:, :, 1:, 1:] = in[:, :, 1::2, 1::2], row/col
        # 0 = zero padding), zero-padded to a lane-dense (c, 128) slab.  Fuses under jit.
        xt = jnp.transpose(x_nchw, (1, 0, 2, 3)).astype(jnp.float32)   # (c, n, h0, w0)
        slab = jnp.zeros((c, n, h1, w1), jnp.float32)
        slab = slab.at[:, :, 1:, 1:].set(xt[:, :, 1::2, 1::2])
        x2d = jnp.pad(slab.reshape(c, l1), ((0, 0), (0, LANES - l1)))
        out2d = call(x2d, p, g2)
        return out2d[:, :l2].reshape(c, n, h2, w2).transpose(1, 0, 2, 3)

    return forward


def _reference_forward(x, w_oi, bias):
    # pure-JAX reference for the correctness check
    c = w_oi.shape[0]
    w4 = w_oi.reshape(c, c, 1, 1)

    def conv(v):
        return jax.lax.conv_general_dilated(
            v, w4, window_strides=(2, 2), padding=((1, 1), (1, 1)),
            dimension_numbers=("NCHW", "OIHW", "NCHW"),
            precision=jax.lax.Precision.HIGHEST) + bias.reshape(1, c, 1, 1)

    def bn(v):
        m = jnp.mean(v, axis=(0, 2, 3), keepdims=True)
        var = jnp.mean((v - m) ** 2, axis=(0, 2, 3), keepdims=True)
        return (v - m) * jax.lax.rsqrt(var + EPS)

    v1 = conv(x); v2 = bn(v1)
    v3 = conv(v2); v4 = bn(v3)
    v5 = conv(v4); v6 = bn(v5)
    return v6 + bn(v4)


if __name__ == "__main__":
    key = jax.random.PRNGKey(0)
    kx, kw, kb = jax.random.split(key, 3)

    # small shapes consistent with the module (batch=2, channels=8, spatial=6)
    n, c, h, w = 2, 8, 6, 6
    x = jax.random.normal(kx, (n, c, h, w), dtype=jnp.float32)
    # deterministic synthetic conv parameters: (Cout, Cin) weight of the 1x1 conv + bias
    w_oi = jax.random.normal(kw, (c, c), dtype=jnp.float32) * (1.0 / np.sqrt(c))
    bias = jax.random.normal(kb, (c,), dtype=jnp.float32) * 0.1

    forward = build_model_forward(np.asarray(w_oi), np.asarray(bias), n=n, h0=h, w0=w)
    out = forward(x)
    jax.block_until_ready(out)

    ref = _reference_forward(x, w_oi, bias)
    np.testing.assert_allclose(np.asarray(out), np.asarray(ref), rtol=1e-2, atol=1e-2)

    print("KERNEL_OK")
</pallas_src>

<mosaic_0001>
module attributes {stable_mosaic.version = 11 : i64} {
  func.func @_model_kernel(%arg0: memref<8x128xf32, #tpu.memory_space<vmem>>, %arg1: memref<16x128xf32, #tpu.memory_space<vmem>>, %arg2: memref<128x128xf32, #tpu.memory_space<vmem>>, %arg3: memref<8x128xf32, #tpu.memory_space<vmem>>) attributes {dimension_semantics = [], scalar_prefetch = 0 : i64, scratch_operands = 0 : i64, tpu.core_type = #tpu.core_type<tc>} {
    %c0 = arith.constant 0 : index
    %c0_0 = arith.constant 0 : index
    %0 = vector.load %arg0[%c0, %c0_0] : memref<8x128xf32, #tpu.memory_space<vmem>>, vector<8x128xf32>
    %c0_1 = arith.constant 0 : index
    %c0_2 = arith.constant 0 : index
    %1 = vector.load %arg1[%c0_1, %c0_2] : memref<16x128xf32, #tpu.memory_space<vmem>>, vector<16x128xf32>
    %2 = vector.extract_strided_slice %1 {offsets = [0, 0], sizes = [8, 8], strides = [1, 1]} : vector<16x128xf32> to vector<8x8xf32>
    %3 = vector.extract_strided_slice %1 {offsets = [0, 8], sizes = [8, 1], strides = [1, 1]} : vector<16x128xf32> to vector<8x1xf32>
    %4 = vector.extract_strided_slice %1 {offsets = [8, 0], sizes = [1, 128], strides = [1, 1]} : vector<16x128xf32> to vector<1x128xf32>
    %5 = vector.extract_strided_slice %1 {offsets = [9, 0], sizes = [1, 128], strides = [1, 1]} : vector<16x128xf32> to vector<1x128xf32>
    %6 = vector.extract_strided_slice %1 {offsets = [10, 0], sizes = [1, 128], strides = [1, 1]} : vector<16x128xf32> to vector<1x128xf32>
    %7 = vector.broadcast %3 : vector<8x1xf32> to vector<8x128xf32>
    %8 = vector.broadcast %4 : vector<1x128xf32> to vector<8x128xf32>
    %9 = arith.mulf %7, %8 : vector<8x128xf32>
    %10 = vector.broadcast %3 : vector<8x1xf32> to vector<8x128xf32>
    %11 = vector.broadcast %5 : vector<1x128xf32> to vector<8x128xf32>
    %12 = arith.mulf %10, %11 : vector<8x128xf32>
    %cst = arith.constant dense<0.000000e+00> : vector<8x128xf32>
    %13 = tpu.matmul %2, %0, %cst {dimension_numbers = #tpu.dot_dimension_numbers<[1], [0], [0], [1], [0, 0, 1, 1], [], []>, precision = #tpu.contract_precision<fp32>} : vector<8x8xf32>, vector<8x128xf32>, vector<8x128xf32> -> vector<8x128xf32>
    %14 = arith.addf %13, %9 : vector<8x128xf32>
    %cst_3 = arith.constant dense<0.000000e+00> : vector<8xf32>
    %15 = vector.multi_reduction <add>, %14, %cst_3 [1] : vector<8x128xf32> to vector<8xf32>
    %16 = vector.shape_cast %15 : vector<8xf32> to vector<8x1xf32>
    %cst_4 = arith.constant 3.125000e-02 : f32
    %17 = vector.broadcast %cst_4 : f32 to vector<8x1xf32>
    %18 = arith.mulf %16, %17 : vector<8x1xf32>
    %19 = arith.mulf %14, %14 : vector<8x128xf32>
    %cst_5 = arith.constant dense<0.000000e+00> : vector<8xf32>
    %20 = vector.multi_reduction <add>, %19, %cst_5 [1] : vector<8x128xf32> to vector<8xf32>
    %21 = vector.shape_cast %20 : vector<8xf32> to vector<8x1xf32>
    %cst_6 = arith.constant 3.125000e-02 : f32
    %22 = vector.broadcast %cst_6 : f32 to vector<8x1xf32>
    %23 = arith.mulf %21, %22 : vector<8x1xf32>
    %24 = arith.mulf %18, %18 : vector<8x1xf32>
    %25 = arith.subf %23, %24 : vector<8x1xf32>
    %cst_7 = arith.constant 9.99999974E-6 : f32
    %26 = vector.broadcast %cst_7 : f32 to vector<8x1xf32>
    %27 = arith.addf %25, %26 : vector<8x1xf32>
    %28 = math.rsqrt %27 : vector<8x1xf32>
    %29 = vector.broadcast %18 : vector<8x1xf32> to vector<8x128xf32>
    %30 = arith.subf %14, %29 : vector<8x128xf32>
    %c0_8 = arith.constant 0 : index
    %c0_9 = arith.constant 0 : index
    %31 = vector.load %arg2[%c0_8, %c0_9] : memref<128x128xf32, #tpu.memory_space<vmem>>, vector<128x128xf32>
    %cst_10 = arith.constant dense<0.000000e+00> : vector<8x128xf32>
    %32 = tpu.matmul %30, %31, %cst_10 {dimension_numbers = #tpu.dot_dimension_numbers<[1], [0], [0], [1], [0, 0, 1, 1], [], []>, precision = #tpu.contract_precision<fp32>} : vector<8x128xf32>, vector<128x128xf32>, vector<8x128xf32> -> vector<8x128xf32>
    %33 = vector.broadcast %28 : vector<8x1xf32> to vector<8x128xf32>
    %34 = arith.mulf %33, %32 : vector<8x128xf32>
    %cst_11 = arith.constant dense<0.000000e+00> : vector<8x128xf32>
    %35 = tpu.matmul %2, %34, %cst_11 {dimension_numbers = #tpu.dot_dimension_numbers<[1], [0], [0], [1], [0, 0, 1, 1], [], []>, precision = #tpu.contract_precision<fp32>} : vector<8x8xf32>, vector<8x128xf32>, vector<8x128xf32> -> vector<8x128xf32>
    %36 = arith.addf %35, %12 : vector<8x128xf32>
    %cst_12 = arith.constant dense<0.000000e+00> : vector<8xf32>
    %37 = vector.multi_reduction <add>, %36, %cst_12 [1] : vector<8x128xf32> to vector<8xf32>
    %38 = vector.shape_cast %37 : vector<8xf32> to vector<8x1xf32>
    %cst_13 = arith.constant 0.055555556 : f32
    %39 = vector.broadcast %cst_13 : f32 to vector<8x1xf32>
    %40 = arith.mulf %38, %39 : vector<8x1xf32>
    %41 = arith.mulf %36, %36 : vector<8x128xf32>
    %cst_14 = arith.constant dense<0.000000e+00> : vector<8xf32>
    %42 = vector.multi_reduction <add>, %41, %cst_14 [1] : vector<8x128xf32> to vector<8xf32>
    %43 = vector.shape_cast %42 : vector<8xf32> to vector<8x1xf32>
    %cst_15 = arith.constant 0.055555556 : f32
    %44 = vector.broadcast %cst_15 : f32 to vector<8x1xf32>
    %45 = arith.mulf %43, %44 : vector<8x1xf32>
    %46 = arith.mulf %40, %40 : vector<8x1xf32>
    %47 = arith.subf %45, %46 : vector<8x1xf32>
    %cst_16 = arith.constant 9.99999974E-6 : f32
    %48 = vector.broadcast %cst_16 : f32 to vector<8x1xf32>
    %49 = arith.addf %47, %48 : vector<8x1xf32>
    %50 = math.rsqrt %49 : vector<8x1xf32>
    %51 = vector.broadcast %40 : vector<8x1xf32> to vector<8x128xf32>
    %52 = arith.subf %36, %51 : vector<8x128xf32>
    %53 = vector.broadcast %50 : vector<8x1xf32> to vector<8x128xf32>
    %54 = arith.mulf %52, %53 : vector<8x128xf32>
    %55 = vector.broadcast %6 : vector<1x128xf32> to vector<8x128xf32>
    %56 = arith.mulf %54, %55 : vector<8x128xf32>
    %cst_17 = arith.constant dense<0.000000e+00> : vector<8x128xf32>
    %57 = tpu.matmul %2, %56, %cst_17 {dimension_numbers = #tpu.dot_dimension_numbers<[1], [0], [0], [1], [0, 0, 1, 1], [], []>, precision = #tpu.contract_precision<fp32>} : vector<8x8xf32>, vector<8x128xf32>, vector<8x128xf32> -> vector<8x128xf32>
    %58 = arith.addf %57, %12 : vector<8x128xf32>
    %cst_18 = arith.constant dense<0.000000e+00> : vector<8xf32>
    %59 = vector.multi_reduction <add>, %58, %cst_18 [1] : vector<8x128xf32> to vector<8xf32>
    %60 = vector.shape_cast %59 : vector<8xf32> to vector<8x1xf32>
    %cst_19 = arith.constant 0.055555556 : f32
    %61 = vector.broadcast %cst_19 : f32 to vector<8x1xf32>
    %62 = arith.mulf %60, %61 : vector<8x1xf32>
    %63 = arith.mulf %58, %58 : vector<8x128xf32>
    %cst_20 = arith.constant dense<0.000000e+00> : vector<8xf32>
    %64 = vector.multi_reduction <add>, %63, %cst_20 [1] : vector<8x128xf32> to vector<8xf32>
    %65 = vector.shape_cast %64 : vector<8xf32> to vector<8x1xf32>
    %cst_21 = arith.constant 0.055555556 : f32
    %66 = vector.broadcast %cst_21 : f32 to vector<8x1xf32>
    %67 = arith.mulf %65, %66 : vector<8x1xf32>
    %68 = arith.mulf %62, %62 : vector<8x1xf32>
    %69 = arith.subf %67, %68 : vector<8x1xf32>
    %cst_22 = arith.constant 9.99999974E-6 : f32
    %70 = vector.broadcast %cst_22 : f32 to vector<8x1xf32>
    %71 = arith.addf %69, %70 : vector<8x1xf32>
    %72 = math.rsqrt %71 : vector<8x1xf32>
    %73 = vector.broadcast %5 : vector<1x128xf32> to vector<8x128xf32>
    %74 = arith.mulf %54, %73 : vector<8x128xf32>
    %cst_23 = arith.constant dense<0.000000e+00> : vector<8xf32>
    %75 = vector.multi_reduction <add>, %74, %cst_23 [1] : vector<8x128xf32> to vector<8xf32>
    %76 = vector.shape_cast %75 : vector<8xf32> to vector<8x1xf32>
    %cst_24 = arith.constant 0.055555556 : f32
    %77 = vector.broadcast %cst_24 : f32 to vector<8x1xf32>
    %78 = arith.mulf %76, %77 : vector<8x1xf32>
    %79 = arith.mulf %74, %74 : vector<8x128xf32>
    %cst_25 = arith.constant dense<0.000000e+00> : vector<8xf32>
    %80 = vector.multi_reduction <add>, %79, %cst_25 [1] : vector<8x128xf32> to vector<8xf32>
    %81 = vector.shape_cast %80 : vector<8xf32> to vector<8x1xf32>
    %cst_26 = arith.constant 0.055555556 : f32
    %82 = vector.broadcast %cst_26 : f32 to vector<8x1xf32>
    %83 = arith.mulf %81, %82 : vector<8x1xf32>
    %84 = arith.mulf %78, %78 : vector<8x1xf32>
    %85 = arith.subf %83, %84 : vector<8x1xf32>
    %cst_27 = arith.constant 9.99999974E-6 : f32
    %86 = vector.broadcast %cst_27 : f32 to vector<8x1xf32>
    %87 = arith.addf %85, %86 : vector<8x1xf32>
    %88 = math.rsqrt %87 : vector<8x1xf32>
    %89 = vector.broadcast %62 : vector<8x1xf32> to vector<8x128xf32>
    %90 = arith.subf %58, %89 : vector<8x128xf32>
    %91 = vector.broadcast %72 : vector<8x1xf32> to vector<8x128xf32>
    %92 = arith.mulf %90, %91 : vector<8x128xf32>
    %93 = vector.broadcast %78 : vector<8x1xf32> to vector<8x128xf32>
    %94 = arith.subf %54, %93 : vector<8x128xf32>
    %95 = vector.broadcast %88 : vector<8x1xf32> to vector<8x128xf32>
    %96 = arith.mulf %94, %95 : vector<8x128xf32>
    %97 = arith.addf %92, %96 : vector<8x128xf32>
    %c0_28 = arith.constant 0 : index
    %c0_29 = arith.constant 0 : index
    %98 = vector.load %arg3[%c0_28, %c0_29] : memref<8x128xf32, #tpu.memory_space<vmem>>, vector<8x128xf32>
    tpu.vector_store %arg3[%c0_28, %c0_29], %97 {strides = array<i32>} : memref<8x128xf32, #tpu.memory_space<vmem>>, vector<8x128xf32>,
    return
  }
}

</mosaic_0001>

<llo_original>
// kernel: forward.1
$region0: #{forward.1}
  #allocation0 [shape = 'u32[]', space=smem, size = 0x4, offset = 0x4, fixed_abs, tag = 'smem constant byte address 0x4 - core index']
  #allocation1 [shape = 'u32[144,128]{1,0:T(1,128)}', space=vmem, size = 0x12000, scoped, tag = 'internal scratch']
  %s0 = inlined_call_operand.vmem [shape: f32[8,128], index: 0, kind: input, shape index: {}]
  %s1 = inlined_call_operand.vmem [shape: f32[16,128], index: 1, kind: input, shape index: {}]
  %s2 = inlined_call_operand.vmem [shape: f32[128,128], index: 2, kind: input, shape index: {}]
  %s3 = inlined_call_operand.vmem [shape: f32[8,128], index: 3, kind: output, shape index: {}]
  %s4 = sld [smem:[#allocation0]]
  $region22: #{forward.1} parent=0
    _
  %s6 = ssub.s32 1, %s4
  %s7 = scalar_select 0, %s6, %s4
  // Predicated region
  $region2: #{forward.1} parent=0 // pred_check
    _
  $region3: #{forward.1} parent=0 // pred_check_branch
    %9 = sbr.rel (0) target = $region5
  $region4: #{forward.1} parent=0 // pred_region
    _
  $region5: #{forward.1} parent=0 // pred_fallthru
    _
  // Predicated region
  $region6: #{forward.1} parent=0 // pred_check
    _
  $region7: #{forward.1} parent=0 // pred_check_branch
    %11 = sbr.rel (0) target = $region9
  $region8: #{forward.1} parent=0 // pred_region
    _
  $region9: #{forward.1} parent=0 // pred_fallthru
    _
  // Predicated region
  $region10: #{forward.1} parent=0 // pred_check
    _
  $region11: #{forward.1} parent=0 // pred_check_branch
    %13 = sbr.rel (0) target = $region13
  $region12: #{forward.1} parent=0 // pred_region
    _
  $region13: #{forward.1} parent=0 // pred_fallthru
    _
  %v14 = vld [vmem:[%s0] sm:$0xff]
  %v15 = vld [vmem:[%s1] sm:$0xff]
  %v16 = vld [vmem:[%s1 + $0x8] sm:$0xff]
  %18 = vset.pattern.permute.xlu0 8
  %19 = vperm.xlu0 %18, %v15
  %v20 = vpop.permute.xlu0 %19
  %v22 = vlaneseq
  %v23 = vshrl.u32 %v22, 7
  %v24 = vsub.s32 0, %v23
  %v25 = vrot.slane %v16, %v24
  %v26 = vmul.f32 %v20, %v25
  %v27 = vlaneseq
  %v28 = vshrl.u32 %v27, 7
  %v29 = vsub.s32 1, %v28
  %v30 = vrot.slane %v16, %v29
  %v31 = vmul.f32 %v20, %v30
  %vm32 = vcmask 64512
  %v33 = vsel %vm32, %v15, 0
  %35 = vmatprep.subr.mxu0 0.0
  %36 = vmatpush1.msra.mxu0 0.0
  %37 = vmatprep.subr.mxu0 0.0
  %38 = vmatpush1.msra.mxu0 0.0
  %39 = vmatprep.subr.mxu0 0.0
  %40 = vmatpush1.msra.mxu0 0.0
  %41 = vmatprep.subr.mxu0 0.0
  %42 = vmatpush1.msra.mxu0 0.0
  %43 = vmatprep.subr.mxu0 0.0
  %44 = vmatpush1.msra.mxu0 0.0
  %45 = vmatprep.subr.mxu0 0.0
  %46 = vmatpush1.msra.mxu0 0.0
  %47 = vmatprep.subr.mxu0 0.0
  %48 = vmatpush1.msra.mxu0 0.0
  %49 = vmatprep.subr.mxu0 0.0
  %50 = vmatpush1.msra.mxu0 0.0
  %51 = vmatprep.subr.mxu0 0.0
  %52 = vmatpush1.msra.mxu0 0.0
  %53 = vmatprep.subr.mxu0 0.0
  %54 = vmatpush1.msra.mxu0 0.0
  %55 = vmatprep.subr.mxu0 0.0
  %56 = vmatpush1.msra.mxu0 0.0
  %57 = vmatprep.subr.mxu0 0.0
  %58 = vmatpush1.msra.mxu0 0.0
  %59 = vmatprep.subr.mxu0 0.0
  %60 = vmatpush1.msra.mxu0 0.0
  %61 = vmatprep.subr.mxu0 0.0
  %62 = vmatpush1.msra.mxu0 0.0
  %63 = vmatprep.subr.mxu0 0.0
  %64 = vmatpush1.msra.mxu0 0.0
  %65 = vmatprep.subr.mxu0 0.0
  %v66 = vand.u32 %v14, 4294901760
  %67 = vmatpush1.msra.mxu0 %v66
  %68 = vmatprep.subr.mxu0 0.0
  %69 = vmatpush2.msra.mxu0 0.0
  %70 = vmatprep.subr.mxu0 0.0
  %71 = vmatpush2.msra.mxu0 0.0
  %72 = vmatprep.subr.mxu0 0.0
  %73 = vmatpush2.msra.mxu0 0.0
  %74 = vmatprep.subr.mxu0 0.0
  %75 = vmatpush2.msra.mxu0 0.0
  %76 = vmatprep.subr.mxu0 0.0
  %77 = vmatpush2.msra.mxu0 0.0
  %78 = vmatprep.subr.mxu0 0.0
  %79 = vmatpush2.msra.mxu0 0.0
  %80 = vmatprep.subr.mxu0 0.0
  %81 = vmatpush2.msra.mxu0 0.0
  %82 = vmatprep.subr.mxu0 0.0
  %83 = vmatpush2.msra.mxu0 0.0
  %84 = vmatprep.subr.mxu0 0.0
  %85 = vmatpush2.msra.mxu0 0.0
  %86 = vmatprep.subr.mxu0 0.0
  %87 = vmatpush2.msra.mxu0 0.0
  %88 = vmatprep.subr.mxu0 0.0
  %89 = vmatpush2.msra.mxu0 0.0
  %90 = vmatprep.subr.mxu0 0.0
  %91 = vmatpush2.msra.mxu0 0.0
  %92 = vmatprep.subr.mxu0 0.0
  %93 = vmatpush2.msra.mxu0 0.0
  %94 = vmatprep.subr.mxu0 0.0
  %95 = vmatpush2.msra.mxu0 0.0
  %96 = vmatprep.subr.mxu0 0.0
  %97 = vmatpush2.msra.mxu0 0.0
  %98 = vmatprep.subr.mxu0 0.0
  %99 = vmatpush2.msra.mxu0 0.0
  %100 = vmatprep.mubr.f32.mxu0 0.0
  %v101 = vand.u32 %v33, 4294901760
  %v102 = vsub.f32 %v33, %v101
  %v103 = vand.u32 %v102, 4294901760
  %v104 = vsub.f32 %v102, %v103
  %v105 = vand.u32 %v104, 4294901760
  %106 = vmatmul.mubr.f32.gmra.mxu0 %v105
  %v107 = vpop.f32.mrf.mxu0
  %v108 = vadd.f32 %v26, %v107
  %v109 = vpop.f32.mrf.mxu0
  %110 = vdwg.mxu0
  %111 = vmatprep.subr.mxu0 0.0
  %112 = vmatpush1.msra.mxu0 0.0
  %113 = vmatprep.subr.mxu0 0.0
  %114 = vmatpush1.msra.mxu0 0.0
  %115 = vmatprep.subr.mxu0 0.0
  %116 = vmatpush1.msra.mxu0 0.0
  %117 = vmatprep.subr.mxu0 0.0
  %118 = vmatpush1.msra.mxu0 0.0
  %119 = vmatprep.subr.mxu0 0.0
  %120 = vmatpush1.msra.mxu0 0.0
  %121 = vmatprep.subr.mxu0 0.0
  %122 = vmatpush1.msra.mxu0 0.0
  %123 = vmatprep.subr.mxu0 0.0
  %124 = vmatpush1.msra.mxu0 0.0
  %125 = vmatprep.subr.mxu0 0.0
  %126 = vmatpush1.msra.mxu0 0.0
  %127 = vmatprep.subr.mxu0 0.0
  %128 = vmatpush1.msra.mxu0 0.0
  %129 = vmatprep.subr.mxu0 0.0
  %130 = vmatpush1.msra.mxu0 0.0
  %131 = vmatprep.subr.mxu0 0.0
  %132 = vmatpush1.msra.mxu0 0.0
  %133 = vmatprep.subr.mxu0 0.0
  %134 = vmatpush1.msra.mxu0 0.0
  %135 = vmatprep.subr.mxu0 0.0
  %136 = vmatpush1.msra.mxu0 0.0
  %137 = vmatprep.subr.mxu0 0.0
  %138 = vmatpush1.msra.mxu0 0.0
  %139 = vmatprep.subr.mxu0 0.0
  %140 = vmatpush1.msra.mxu0 0.0
  %141 = vmatprep.subr.mxu0 0.0
  %v142 = vand.u32 %v14, 4294901760
  %v143 = vsub.f32 %v14, %v142
  %v144 = vand.u32 %v143, 4294901760
  %v145 = vsub.f32 %v143, %v144
  %v146 = vand.u32 %v145, 4294901760
  %147 = vmatpush1.msra.mxu0 %v146
  %148 = vmatprep.subr.mxu0 0.0
  %149 = vmatpush2.msra.mxu0 0.0
  %150 = vmatprep.subr.mxu0 0.0
  %151 = vmatpush2.msra.mxu0 0.0
  %152 = vmatprep.subr.mxu0 0.0
  %153 = vmatpush2.msra.mxu0 0.0
  %154 = vmatprep.subr.mxu0 0.0
  %155 = vmatpush2.msra.mxu0 0.0
  %156 = vmatprep.subr.mxu0 0.0
  %157 = vmatpush2.msra.mxu0 0.0
  %158 = vmatprep.subr.mxu0 0.0
  %159 = vmatpush2.msra.mxu0 0.0
  %160 = vmatprep.subr.mxu0 0.0
  %161 = vmatpush2.msra.mxu0 0.0
  %162 = vmatprep.subr.mxu0 0.0
  %163 = vmatpush2.msra.mxu0 0.0
  %164 = vmatprep.subr.mxu0 0.0
  %165 = vmatpush2.msra.mxu0 0.0
  %166 = vmatprep.subr.mxu0 0.0
  %167 = vmatpush2.msra.mxu0 0.0
  %168 = vmatprep.subr.mxu0 0.0
  %169 = vmatpush2.msra.mxu0 0.0
  %170 = vmatprep.subr.mxu0 0.0
  %171 = vmatpush2.msra.mxu0 0.0
  %172 = vmatprep.subr.mxu0 0.0
  %173 = vmatpush2.msra.mxu0 0.0
  %174 = vmatprep.subr.mxu0 0.0
  %175 = vmatpush2.msra.mxu0 0.0
  %176 = vmatprep.subr.mxu0 0.0
  %177 = vmatpush2.msra.mxu0 0.0
  %178 = vmatprep.subr.mxu0 0.0
  %179 = vmatpush2.msra.mxu0 0.0
  %180 = vmatprep.mubr.f32.mxu0 0.0
  %v181 = vand.u32 %v33, 4294901760
  %182 = vmatmul.mubr.f32.gmra.mxu0 %v181
  %v183 = vpop.f32.mrf.mxu0
  %v184 = vadd.f32 %v108, %v183
  %v185 = vpop.f32.mrf.mxu0
  %186 = vdwg.mxu0
  %187 = vmatprep.subr.mxu0 0.0
  %188 = vmatpush1.msra.mxu0 0.0
  %189 = vmatprep.subr.mxu0 0.0
  %190 = vmatpush1.msra.mxu0 0.0
  %191 = vmatprep.subr.mxu0 0.0
  %192 = vmatpush1.msra.mxu0 0.0
  %193 = vmatprep.subr.mxu0 0.0
  %194 = vmatpush1.msra.mxu0 0.0
  %195 = vmatprep.subr.mxu0 0.0
  %196 = vmatpush1.msra.mxu0 0.0
  %197 = vmatprep.subr.mxu0 0.0
  %198 = vmatpush1.msra.mxu0 0.0
  %199 = vmatprep.subr.mxu0 0.0
  %200 = vmatpush1.msra.mxu0 0.0
  %201 = vmatprep.subr.mxu0 0.0
  %202 = vmatpush1.msra.mxu0 0.0
  %203 = vmatprep.subr.mxu0 0.0
  %204 = vmatpush1.msra.mxu0 0.0
  %205 = vmatprep.subr.mxu0 0.0
  %206 = vmatpush1.msra.mxu0 0.0
  %207 = vmatprep.subr.mxu0 0.0
  %208 = vmatpush1.msra.mxu0 0.0
  %209 = vmatprep.subr.mxu0 0.0
  %210 = vmatpush1.msra.mxu0 0.0
  %211 = vmatprep.subr.mxu0 0.0
  %212 = vmatpush1.msra.mxu0 0.0
  %213 = vmatprep.subr.mxu0 0.0
  %214 = vmatpush1.msra.mxu0 0.0
  %215 = vmatprep.subr.mxu0 0.0
  %216 = vmatpush1.msra.mxu0 0.0
  %217 = vmatprep.subr.mxu0 0.0
  %v218 = vand.u32 %v14, 4294901760
  %v219 = vsub.f32 %v14, %v218
  %220 = vmatpush1.msra.mxu0 %v219
  %221 = vmatprep.subr.mxu0 0.0
  %222 = vmatpush2.msra.mxu0 0.0
  %223 = vmatprep.subr.mxu0 0.0
  %224 = vmatpush2.msra.mxu0 0.0
  %225 = vmatprep.subr.mxu0 0.0
  %226 = vmatpush2.msra.mxu0 0.0
  %227 = vmatprep.subr.mxu0 0.0
  %228 = vmatpush2.msra.mxu0 0.0
  %229 = vmatprep.subr.mxu0 0.0
  %230 = vmatpush2.msra.mxu0 0.0
  %231 = vmatprep.subr.mxu0 0.0
  %232 = vmatpush2.msra.mxu0 0.0
  %233 = vmatprep.subr.mxu0 0.0
  %234 = vmatpush2.msra.mxu0 0.0
  %235 = vmatprep.subr.mxu0 0.0
  %236 = vmatpush2.msra.mxu0 0.0
  %237 = vmatprep.subr.mxu0 0.0
  %238 = vmatpush2.msra.mxu0 0.0
  %239 = vmatprep.subr.mxu0 0.0
  %240 = vmatpush2.msra.mxu0 0.0
  %241 = vmatprep.subr.mxu0 0.0
  %242 = vmatpush2.msra.mxu0 0.0
  %243 = vmatprep.subr.mxu0 0.0
  %244 = vmatpush2.msra.mxu0 0.0
  %245 = vmatprep.subr.mxu0 0.0
  %246 = vmatpush2.msra.mxu0 0.0
  %247 = vmatprep.subr.mxu0 0.0
  %248 = vmatpush2.msra.mxu0 0.0
  %249 = vmatprep.subr.mxu0 0.0
  %250 = vmatpush2.msra.mxu0 0.0
  %251 = vmatprep.subr.mxu0 0.0
  %252 = vmatpush2.msra.mxu0 0.0
  %253 = vmatprep.mubr.f32.mxu0 0.0
  %v254 = vand.u32 %v33, 4294901760
  %v255 = vsub.f32 %v33, %v254
  %256 = vmatmul.mubr.f32.gmra.mxu0 %v255
  %v257 = vpop.f32.mrf.mxu0
  %v258 = vadd.f32 %v184, %v257
  %v259 = vpop.f32.mrf.mxu0
  %260 = vdwg.mxu0
  %261 = vmatprep.subr.mxu0 0.0
  %262 = vmatpush1.msra.mxu0 0.0
  %263 = vmatprep.subr.mxu0 0.0
  %264 = vmatpush1.msra.mxu0 0.0
  %265 = vmatprep.subr.mxu0 0.0
  %266 = vmatpush1.msra.mxu0 0.0
  %267 = vmatprep.subr.mxu0 0.0
  %268 = vmatpush1.msra.mxu0 0.0
  %269 = vmatprep.subr.mxu0 0.0
  %270 = vmatpush1.msra.mxu0 0.0
  %271 = vmatprep.subr.mxu0 0.0
  %272 = vmatpush1.msra.mxu0 0.0
  %273 = vmatprep.subr.mxu0 0.0
  %274 = vmatpush1.msra.mxu0 0.0
  %275 = vmatprep.subr.mxu0 0.0
  %276 = vmatpush1.msra.mxu0 0.0
  %277 = vmatprep.subr.mxu0 0.0
  %278 = vmatpush1.msra.mxu0 0.0
  %279 = vmatprep.subr.mxu0 0.0
  %280 = vmatpush1.msra.mxu0 0.0
  %281 = vmatprep.subr.mxu0 0.0
  %282 = vmatpush1.msra.mxu0 0.0
  %283 = vmatprep.subr.mxu0 0.0
  %284 = vmatpush1.msra.mxu0 0.0
  %285 = vmatprep.subr.mxu0 0.0
  %286 = vmatpush1.msra.mxu0 0.0
  %287 = vmatprep.subr.mxu0 0.0
  %288 = vmatpush1.msra.mxu0 0.0
  %289 = vmatprep.subr.mxu0 0.0
  %290 = vmatpush1.msra.mxu0 0.0
  %291 = vmatprep.subr.mxu0 0.0
  %v292 = vand.u32 %v14, 4294901760
  %293 = vmatpush1.msra.mxu0 %v292
  %294 = vmatprep.subr.mxu0 0.0
  %295 = vmatpush2.msra.mxu0 0.0
  %296 = vmatprep.subr.mxu0 0.0
  %297 = vmatpush2.msra.mxu0 0.0
  %298 = vmatprep.subr.mxu0 0.0
  %299 = vmatpush2.msra.mxu0 0.0
  %300 = vmatprep.subr.mxu0 0.0
  %301 = vmatpush2.msra.mxu0 0.0
  %302 = vmatprep.subr.mxu0 0.0
  %303 = vmatpush2.msra.mxu0 0.0
  %304 = vmatprep.subr.mxu0 0.0
  %305 = vmatpush2.msra.mxu0 0.0
  %306 = vmatprep.subr.mxu0 0.0
  %307 = vmatpush2.msra.mxu0 0.0
  %308 = vmatprep.subr.mxu0 0.0
  %309 = vmatpush2.msra.mxu0 0.0
  %310 = vmatprep.subr.mxu0 0.0
  %311 = vmatpush2.msra.mxu0 0.0
  %312 = vmatprep.subr.mxu0 0.0
  %313 = vmatpush2.msra.mxu0 0.0
  %314 = vmatprep.subr.mxu0 0.0
  %315 = vmatpush2.msra.mxu0 0.0
  %316 = vmatprep.subr.mxu0 0.0
  %317 = vmatpush2.msra.mxu0 0.0
  %318 = vmatprep.subr.mxu0 0.0
  %319 = vmatpush2.msra.mxu0 0.0
  %320 = vmatprep.subr.mxu0 0.0
  %321 = vmatpush2.msra.mxu0 0.0
  %322 = vmatprep.subr.mxu0 0.0
  %323 = vmatpush2.msra.mxu0 0.0
  %324 = vmatprep.subr.mxu0 0.0
  %325 = vmatpush2.msra.mxu0 0.0
  %326 = vmatprep.mubr.f32.mxu0 0.0
  %v327 = vand.u32 %v33, 4294901760
  %v328 = vsub.f32 %v33, %v327
  %v329 = vand.u32 %v328, 4294901760
  %330 = vmatmul.mubr.f32.gmra.mxu0 %v329
  %v331 = vpop.f32.mrf.mxu0
  %v332 = vadd.f32 %v258, %v331
  %v333 = vpop.f32.mrf.mxu0
  %334 = vdwg.mxu0
  %335 = vmatprep.subr.mxu0 0.0
  %336 = vmatpush1.msra.mxu0 0.0
  %337 = vmatprep.subr.mxu0 0.0
  %338 = vmatpush1.msra.mxu0 0.0
  %339 = vmatprep.subr.mxu0 0.0
  %340 = vmatpush1.msra.mxu0 0.0
  %341 = vmatprep.subr.mxu0 0.0
  %342 = vmatpush1.msra.mxu0 0.0
  %343 = vmatprep.subr.mxu0 0.0
  %344 = vmatpush1.msra.mxu0 0.0
  %345 = vmatprep.subr.mxu0 0.0
  %346 = vmatpush1.msra.mxu0 0.0
  %347 = vmatprep.subr.mxu0 0.0
  %348 = vmatpush1.msra.mxu0 0.0
  %349 = vmatprep.subr.mxu0 0.0
  %350 = vmatpush1.msra.mxu0 0.0
  %351 = vmatprep.subr.mxu0 0.0
  %352 = vmatpush1.msra.mxu0 0.0
  %353 = vmatprep.subr.mxu0 0.0
  %354 = vmatpush1.msra.mxu0 0.0
  %355 = vmatprep.subr.mxu0 0.0
  %356 = vmatpush1.msra.mxu0 0.0
  %357 = vmatprep.subr.mxu0 0.0
  %358 = vmatpush1.msra.mxu0 0.0
  %359 = vmatprep.subr.mxu0 0.0
  %360 = vmatpush1.msra.mxu0 0.0
  %361 = vmatprep.subr.mxu0 0.0
  %362 = vmatpush1.msra.mxu0 0.0
  %363 = vmatprep.subr.mxu0 0.0
  %364 = vmatpush1.msra.mxu0 0.0
  %365 = vmatprep.subr.mxu0 0.0
  %v366 = vand.u32 %v14, 4294901760
  %v367 = vsub.f32 %v14, %v366
  %v368 = vand.u32 %v367, 4294901760
  %369 = vmatpush1.msra.mxu0 %v368
  %370 = vmatprep.subr.mxu0 0.0
  %371 = vmatpush2.msra.mxu0 0.0
  %372 = vmatprep.subr.mxu0 0.0
  %373 = vmatpush2.msra.mxu0 0.0
  %374 = vmatprep.subr.mxu0 0.0
  %375 = vmatpush2.msra.mxu0 0.0
  %376 = vmatprep.subr.mxu0 0.0
  %377 = vmatpush2.msra.mxu0 0.0
  %378 = vmatprep.subr.mxu0 0.0
  %379 = vmatpush2.msra.mxu0 0.0
  %380 = vmatprep.subr.mxu0 0.0
  %381 = vmatpush2.msra.mxu0 0.0
  %382 = vmatprep.subr.mxu0 0.0
  %383 = vmatpush2.msra.mxu0 0.0
  %384 = vmatprep.subr.mxu0 0.0
  %385 = vmatpush2.msra.mxu0 0.0
  %386 = vmatprep.subr.mxu0 0.0
  %387 = vmatpush2.msra.mxu0 0.0
  %388 = vmatprep.subr.mxu0 0.0
  %389 = vmatpush2.msra.mxu0 0.0
  %390 = vmatprep.subr.mxu0 0.0
  %391 = vmatpush2.msra.mxu0 0.0
  %392 = vmatprep.subr.mxu0 0.0
  %393 = vmatpush2.msra.mxu0 0.0
  %394 = vmatprep.subr.mxu0 0.0
  %395 = vmatpush2.msra.mxu0 0.0
  %396 = vmatprep.subr.mxu0 0.0
  %397 = vmatpush2.msra.mxu0 0.0
  %398 = vmatprep.subr.mxu0 0.0
  %399 = vmatpush2.msra.mxu0 0.0
  %400 = vmatprep.subr.mxu0 0.0
  %401 = vmatpush2.msra.mxu0 0.0
  %402 = vmatprep.mubr.f32.mxu0 0.0
  %v403 = vand.u32 %v33, 4294901760
  %404 = vmatmul.mubr.f32.gmra.mxu0 %v403
  %v405 = vpop.f32.mrf.mxu0
  %v406 = vadd.f32 %v332, %v405
  %v407 = vpop.f32.mrf.mxu0
  %408 = vdwg.mxu0
  %409 = vmatprep.subr.mxu0 0.0
  %410 = vmatpush1.msra.mxu0 0.0
  %411 = vmatprep.subr.mxu0 0.0
  %412 = vmatpush1.msra.mxu0 0.0
  %413 = vmatprep.subr.mxu0 0.0
  %414 = vmatpush1.msra.mxu0 0.0
  %415 = vmatprep.subr.mxu0 0.0
  %416 = vmatpush1.msra.mxu0 0.0
  %417 = vmatprep.subr.mxu0 0.0
  %418 = vmatpush1.msra.mxu0 0.0
  %419 = vmatprep.subr.mxu0 0.0
  %420 = vmatpush1.msra.mxu0 0.0
  %421 = vmatprep.subr.mxu0 0.0
  %422 = vmatpush1.msra.mxu0 0.0
  %423 = vmatprep.subr.mxu0 0.0
  %424 = vmatpush1.msra.mxu0 0.0
  %425 = vmatprep.subr.mxu0 0.0
  %426 = vmatpush1.msra.mxu0 0.0
  %427 = vmatprep.subr.mxu0 0.0
  %428 = vmatpush1.msra.mxu0 0.0
  %429 = vmatprep.subr.mxu0 0.0
  %430 = vmatpush1.msra.mxu0 0.0
  %431 = vmatprep.subr.mxu0 0.0
  %432 = vmatpush1.msra.mxu0 0.0
  %433 = vmatprep.subr.mxu0 0.0
  %434 = vmatpush1.msra.mxu0 0.0
  %435 = vmatprep.subr.mxu0 0.0
  %436 = vmatpush1.msra.mxu0 0.0
  %437 = vmatprep.subr.mxu0 0.0
  %438 = vmatpush1.msra.mxu0 0.0
  %439 = vmatprep.subr.mxu0 0.0
  %v440 = vand.u32 %v14, 4294901760
  %441 = vmatpush1.msra.mxu0 %v440
  %442 = vmatprep.subr.mxu0 0.0
  %443 = vmatpush2.msra.mxu0 0.0
  %444 = vmatprep.subr.mxu0 0.0
  %445 = vmatpush2.msra.mxu0 0.0
  %446 = vmatprep.subr.mxu0 0.0
  %447 = vmatpush2.msra.mxu0 0.0
  %448 = vmatprep.subr.mxu0 0.0
  %449 = vmatpush2.msra.mxu0 0.0
  %450 = vmatprep.subr.mxu0 0.0
  %451 = vmatpush2.msra.mxu0 0.0
  %452 = vmatprep.subr.mxu0 0.0
  %453 = vmatpush2.msra.mxu0 0.0
  %454 = vmatprep.subr.mxu0 0.0
  %455 = vmatpush2.msra.mxu0 0.0
  %456 = vmatprep.subr.mxu0 0.0
  %457 = vmatpush2.msra.mxu0 0.0
  %458 = vmatprep.subr.mxu0 0.0
  %459 = vmatpush2.msra.mxu0 0.0
  %460 = vmatprep.subr.mxu0 0.0
  %461 = vmatpush2.msra.mxu0 0.0
  %462 = vmatprep.subr.mxu0 0.0
  %463 = vmatpush2.msra.mxu0 0.0
  %464 = vmatprep.subr.mxu0 0.0
  %465 = vmatpush2.msra.mxu0 0.0
  %466 = vmatprep.subr.mxu0 0.0
  %467 = vmatpush2.msra.mxu0 0.0
  %468 = vmatprep.subr.mxu0 0.0
  %469 = vmatpush2.msra.mxu0 0.0
  %470 = vmatprep.subr.mxu0 0.0
  %471 = vmatpush2.msra.mxu0 0.0
  %472 = vmatprep.subr.mxu0 0.0
  %473 = vmatpush2.msra.mxu0 0.0
  %474 = vmatprep.mubr.f32.mxu0 0.0
  %v475 = vand.u32 %v33, 4294901760
  %476 = vmatmul.mubr.f32.gmra.mxu0 %v475
  %v477 = vpop.f32.mrf.mxu0
  %v478 = vadd.f32 %v406, %v477
  %v479 = vpop.f32.mrf.mxu0
  %480 = vdwg.mxu0
  %481 = vadd.xlane.f32.xlu0 %v478
  %v482 = vpop.xlane.xlu0 %481
  %v483 = vmul.f32 %v482, 0.03125
  %v484 = vmul.f32 %v478, %v478
  %485 = vadd.xlane.f32.xlu0 %v484
  %v486 = vpop.xlane.xlu0 %485
  %v487 = vmul.f32 %v486, 0.03125
  %v488 = vmul.f32 %v483, %v483
  %v489 = vsub.f32 %v487, %v488
  %v490 = vadd.f32 %v489, 1e-05
  %v491 = vrsqrt.pop %v490
  %v492 = vsub.f32 %v478, %v483
  %v493 = vld [vmem:[%s2] sm:$0xff]
  %v494 = vld [vmem:[%s2 + $0x8] sm:$0xff]
  %v495 = vld [vmem:[%s2 + $0x10] sm:$0xff]
  %v496 = vld [vmem:[%s2 + $0x18] sm:$0xff]
  %v497 = vld [vmem:[%s2 + $0x20] sm:$0xff]
  %v498 = vld [vmem:[%s2 + $0x28] sm:$0xff]
  %v499 = vld [vmem:[%s2 + $0x30] sm:$0xff]
  %v500 = vld [vmem:[%s2 + $0x38] sm:$0xff]
  %v501 = vld [vmem:[%s2 + $0x40] sm:$0xff]
  %v502 = vld [vmem:[%s2 + $0x48] sm:$0xff]
  %v503 = vld [vmem:[%s2 + $0x50] sm:$0xff]
  %v504 = vld [vmem:[%s2 + $0x58] sm:$0xff]
  %v505 = vld [vmem:[%s2 + $0x60] sm:$0xff]
  %v506 = vld [vmem:[%s2 + $0x68] sm:$0xff]
  %v507 = vld [vmem:[%s2 + $0x70] sm:$0xff]
  %v508 = vld [vmem:[%s2 + $0x78] sm:$0xff]
  %509 = vmatprep.subr.mxu0 0.0
  %v510 = vand.u32 %v508, 4294901760
  %511 = vmatpush1.msra.mxu0 %v510
  %512 = vmatprep.subr.mxu0 0.0
  %v513 = vand.u32 %v507, 4294901760
  %514 = vmatpush1.msra.mxu0 %v513
  %515 = vmatprep.subr.mxu0 0.0
  %v516 = vand.u32 %v506, 4294901760
  %517 = vmatpush1.msra.mxu0 %v516
  %518 = vmatprep.subr.mxu0 0.0
  %v519 = vand.u32 %v505, 4294901760
  %520 = vmatpush1.msra.mxu0 %v519
  %521 = vmatprep.subr.mxu0 0.0
  %v522 = vand.u32 %v504, 4294901760
  %523 = vmatpush1.msra.mxu0 %v522
  %524 = vmatprep.subr.mxu0 0.0
  %v525 = vand.u32 %v503, 4294901760
  %526 = vmatpush1.msra.mxu0 %v525
  %527 = vmatprep.subr.mxu0 0.0
  %v528 = vand.u32 %v502, 4294901760
  %529 = vmatpush1.msra.mxu0 %v528
  %530 = vmatprep.subr.mxu0 0.0
  %v531 = vand.u32 %v501, 4294901760
  %532 = vmatpush1.msra.mxu0 %v531
  %533 = vmatprep.subr.mxu0 0.0
  %v534 = vand.u32 %v500, 4294901760
  %535 = vmatpush1.msra.mxu0 %v534
  %536 = vmatprep.subr.mxu0 0.0
  %v537 = vand.u32 %v499, 4294901760
  %538 = vmatpush1.msra.mxu0 %v537
  %539 = vmatprep.subr.mxu0 0.0
  %v540 = vand.u32 %v498, 4294901760
  %541 = vmatpush1.msra.mxu0 %v540
  %542 = vmatprep.subr.mxu0 0.0
  %v543 = vand.u32 %v497, 4294901760
  %544 = vmatpush1.msra.mxu0 %v543
  %545 = vmatprep.subr.mxu0 0.0
  %v546 = vand.u32 %v496, 4294901760
  %547 = vmatpush1.msra.mxu0 %v546
  %548 = vmatprep.subr.mxu0 0.0
  %v549 = vand.u32 %v495, 4294901760
  %550 = vmatpush1.msra.mxu0 %v549
  %551 = vmatprep.subr.mxu0 0.0
  %v552 = vand.u32 %v494, 4294901760
  %553 = vmatpush1.msra.mxu0 %v552
  %554 = vmatprep.subr.mxu0 0.0
  %v555 = vand.u32 %v493, 4294901760
  %556 = vmatpush1.msra.mxu0 %v555
  %557 = vmatprep.subr.mxu0 0.0
  %558 = vmatpush2.msra.mxu0 0.0
  %559 = vmatprep.subr.mxu0 0.0
  %560 = vmatpush2.msra.mxu0 0.0
  %561 = vmatprep.subr.mxu0 0.0
  %562 = vmatpush2.msra.mxu0 0.0
  %563 = vmatprep.subr.mxu0 0.0
  %564 = vmatpush2.msra.mxu0 0.0
  %565 = vmatprep.subr.mxu0 0.0
  %566 = vmatpush2.msra.mxu0 0.0
  %567 = vmatprep.subr.mxu0 0.0
  %568 = vmatpush2.msra.mxu0 0.0
  %569 = vmatprep.subr.mxu0 0.0
  %570 = vmatpush2.msra.mxu0 0.0
  %571 = vmatprep.subr.mxu0 0.0
  %572 = vmatpush2.msra.mxu0 0.0
  %573 = vmatprep.subr.mxu0 0.0
  %574 = vmatpush2.msra.mxu0 0.0
  %575 = vmatprep.subr.mxu0 0.0
  %576 = vmatpush2.msra.mxu0 0.0
  %577 = vmatprep.subr.mxu0 0.0
  %578 = vmatpush2.msra.mxu0 0.0
  %579 = vmatprep.subr.mxu0 0.0
  %580 = vmatpush2.msra.mxu0 0.0
  %581 = vmatprep.subr.mxu0 0.0
  %582 = vmatpush2.msra.mxu0 0.0
  %583 = vmatprep.subr.mxu0 0.0
  %584 = vmatpush2.msra.mxu0 0.0
  %585 = vmatprep.subr.mxu0 0.0
  %586 = vmatpush2.msra.mxu0 0.0
  %587 = vmatprep.subr.mxu0 0.0
  %588 = vmatpush2.msra.mxu0 0.0
  %589 = vmatprep.mubr.f32.mxu0 0.0
  %v590 = vand.u32 %v492, 4294901760
  %v591 = vsub.f32 %v492, %v590
  %v592 = vand.u32 %v591, 4294901760
  %v593 = vsub.f32 %v591, %v592
  %v594 = vand.u32 %v593, 4294901760
  %595 = vmatmul.mubr.f32.gmra.mxu0 %v594
  %v596 = vpop.f32.mrf.mxu0
  %v597 = vadd.f32 0.0, %v596
  %v598 = vpop.f32.mrf.mxu0
  %599 = vdwg.mxu0
  %600 = vmatprep.subr.mxu0 0.0
  %v601 = vand.u32 %v508, 4294901760
  %v602 = vsub.f32 %v508, %v601
  %v603 = vand.u32 %v602, 4294901760
  %v604 = vsub.f32 %v602, %v603
  %v605 = vand.u32 %v604, 4294901760
  %606 = vmatpush1.msra.mxu0 %v605
  %607 = vmatprep.subr.mxu0 0.0
  %v608 = vand.u32 %v507, 4294901760
  %v609 = vsub.f32 %v507, %v608
  %v610 = vand.u32 %v609, 4294901760
  %v611 = vsub.f32 %v609, %v610
  %v612 = vand.u32 %v611, 4294901760
  %613 = vmatpush1.msra.mxu0 %v612
  %614 = vmatprep.subr.mxu0 0.0
  %v615 = vand.u32 %v506, 4294901760
  %v616 = vsub.f32 %v506, %v615
  %v617 = vand.u32 %v616, 4294901760
  %v618 = vsub.f32 %v616, %v617
  %v619 = vand.u32 %v618, 4294901760
  %620 = vmatpush1.msra.mxu0 %v619
  %621 = vmatprep.subr.mxu0 0.0
  %v622 = vand.u32 %v505, 4294901760
  %v623 = vsub.f32 %v505, %v622
  %v624 = vand.u32 %v623, 4294901760
  %v625 = vsub.f32 %v623, %v624
  %v626 = vand.u32 %v625, 4294901760
  %627 = vmatpush1.msra.mxu0 %v626
  %628 = vmatprep.subr.mxu0 0.0
  %v629 = vand.u32 %v504, 4294901760
  %v630 = vsub.f32 %v504, %v629
  %v631 = vand.u32 %v630, 4294901760
  %v632 = vsub.f32 %v630, %v631
  %v633 = vand.u32 %v632, 4294901760
  %634 = vmatpush1.msra.mxu0 %v633
  %635 = vmatprep.subr.mxu0 0.0
  %v636 = vand.u32 %v503, 4294901760
  %v637 = vsub.f32 %v503, %v636
  %v638 = vand.u32 %v637, 4294901760
  %v639 = vsub.f32 %v637, %v638
  %v640 = vand.u32 %v639, 4294901760
  %641 = vmatpush1.msra.mxu0 %v640
  %642 = vmatprep.subr.mxu0 0.0
  %v643 = vand.u32 %v502, 4294901760
  %v644 = vsub.f32 %v502, %v643
  %v645 = vand.u32 %v644, 4294901760
  %v646 = vsub.f32 %v644, %v645
  %v647 = vand.u32 %v646, 4294901760
  %648 = vmatpush1.msra.mxu0 %v647
  %649 = vmatprep.subr.mxu0 0.0
  %v650 = vand.u32 %v501, 4294901760
  %v651 = vsub.f32 %v501, %v650
  %v652 = vand.u32 %v651, 4294901760
  %v653 = vsub.f32 %v651, %v652
  %v654 = vand.u32 %v653, 4294901760
  %655 = vmatpush1.msra.mxu0 %v654
  %656 = vmatprep.subr.mxu0 0.0
  %v657 = vand.u32 %v500, 4294901760
  %v658 = vsub.f32 %v500, %v657
  %v659 = vand.u32 %v658, 4294901760
  %v660 = vsub.f32 %v658, %v659
  %v661 = vand.u32 %v660, 4294901760
  %662 = vmatpush1.msra.mxu0 %v661
  %663 = vmatprep.subr.mxu0 0.0
  %v664 = vand.u32 %v499, 4294901760
  %v665 = vsub.f32 %v499, %v664
  %v666 = vand.u32 %v665, 4294901760
  %v667 = vsub.f32 %v665, %v666
  %v668 = vand.u32 %v667, 4294901760
  %669 = vmatpush1.msra.mxu0 %v668
  %670 = vmatprep.subr.mxu0 0.0
  %v671 = vand.u32 %v498, 4294901760
  %v672 = vsub.f32 %v498, %v671
  %v673 = vand.u32 %v672, 4294901760
  %v674 = vsub.f32 %v672, %v673
  %v675 = vand.u32 %v674, 4294901760
  %676 = vmatpush1.msra.mxu0 %v675
  %677 = vmatprep.subr.mxu0 0.0
  %v678 = vand.u32 %v497, 4294901760
  %v679 = vsub.f32 %v497, %v678
  %v680 = vand.u32 %v679, 4294901760
  %v681 = vsub.f32 %v679, %v680
  %v682 = vand.u32 %v681, 4294901760
  %683 = vmatpush1.msra.mxu0 %v682
  %684 = vmatprep.subr.mxu0 0.0
  %v685 = vand.u32 %v496, 4294901760
  %v686 = vsub.f32 %v496, %v685
  %v687 = vand.u32 %v686, 4294901760
  %v688 = vsub.f32 %v686, %v687
  %v689 = vand.u32 %v688, 4294901760
  %690 = vmatpush1.msra.mxu0 %v689
  %691 = vmatprep.subr.mxu0 0.0
  %v692 = vand.u32 %v495, 4294901760
  %v693 = vsub.f32 %v495, %v692
  %v694 = vand.u32 %v693, 4294901760
  %v695 = vsub.f32 %v693, %v694
  %v696 = vand.u32 %v695, 4294901760
  %697 = vmatpush1.msra.mxu0 %v696
  %698 = vmatprep.subr.mxu0 0.0
  %v699 = vand.u32 %v494, 4294901760
  %v700 = vsub.f32 %v494, %v699
  %v701 = vand.u32 %v700, 4294901760
  %v702 = vsub.f32 %v700, %v701
  %v703 = vand.u32 %v702, 4294901760
  %704 = vmatpush1.msra.mxu0 %v703
  %705 = vmatprep.subr.mxu0 0.0
  %v706 = vand.u32 %v493, 4294901760
  %v707 = vsub.f32 %v493, %v706
  %v708 = vand.u32 %v707, 4294901760
  %v709 = vsub.f32 %v707, %v708
  %v710 = vand.u32 %v709, 4294901760
  %711 = vmatpush1.msra.mxu0 %v710
  %712 = vmatprep.subr.mxu0 0.0
  %713 = vmatpush2.msra.mxu0 0.0
  %714 = vmatprep.subr.mxu0 0.0
  %715 = vmatpush2.msra.mxu0 0.0
  %716 = vmatprep.subr.mxu0 0.0
  %717 = vmatpush2.msra.mxu0 0.0
  %718 = vmatprep.subr.mxu0 0.0
  %719 = vmatpush2.msra.mxu0 0.0
  %720 = vmatprep.subr.mxu0 0.0
  %721 = vmatpush2.msra.mxu0 0.0
  %722 = vmatprep.subr.mxu0 0.0
  %723 = vmatpush2.msra.mxu0 0.0
  %724 = vmatprep.subr.mxu0 0.0
  %725 = vmatpush2.msra.mxu0 0.0
  %726 = vmatprep.subr.mxu0 0.0
  %727 = vmatpush2.msra.mxu0 0.0
  %728 = vmatprep.subr.mxu0 0.0
  %729 = vmatpush2.msra.mxu0 0.0
  %730 = vmatprep.subr.mxu0 0.0
  %731 = vmatpush2.msra.mxu0 0.0
  %732 = vmatprep.subr.mxu0 0.0
  %733 = vmatpush2.msra.mxu0 0.0
  %734 = vmatprep.subr.mxu0 0.0
  %735 = vmatpush2.msra.mxu0 0.0
  %736 = vmatprep.subr.mxu0 0.0
  %737 = vmatpush2.msra.mxu0 0.0
  %738 = vmatprep.subr.mxu0 0.0
  %739 = vmatpush2.msra.mxu0 0.0
  %740 = vmatprep.subr.mxu0 0.0
  %741 = vmatpush2.msra.mxu0 0.0
  %742 = vmatprep.subr.mxu0 0.0
  %743 = vmatpush2.msra.mxu0 0.0
  %744 = vmatprep.mubr.f32.mxu0 0.0
  %v745 = vand.u32 %v492, 4294901760
  %746 = vmatmul.mubr.f32.gmra.mxu0 %v745
  %v747 = vpop.f32.mrf.mxu0
  %v748 = vadd.f32 %v597, %v747
  %v749 = vpop.f32.mrf.mxu0
  %750 = vdwg.mxu0
  %751 = vmatprep.subr.mxu0 0.0
  %v752 = vand.u32 %v508, 4294901760
  %v753 = vsub.f32 %v508, %v752
  %754 = vmatpush1.msra.mxu0 %v753
  %755 = vmatprep.subr.mxu0 0.0
  %v756 = vand.u32 %v507, 4294901760
  %v757 = vsub.f32 %v507, %v756
  %758 = vmatpush1.msra.mxu0 %v757
  %759 = vmatprep.subr.mxu0 0.0
  %v760 = vand.u32 %v506, 4294901760
  %v761 = vsub.f32 %v506, %v760
  %762 = vmatpush1.msra.mxu0 %v761
  %763 = vmatprep.subr.mxu0 0.0
  %v764 = vand.u32 %v505, 4294901760
  %v765 = vsub.f32 %v505, %v764
  %766 = vmatpush1.msra.mxu0 %v765
  %767 = vmatprep.subr.mxu0 0.0
  %v768 = vand.u32 %v504, 4294901760
  %v769 = vsub.f32 %v504, %v768
  %770 = vmatpush1.msra.mxu0 %v769
  %771 = vmatprep.subr.mxu0 0.0
  %v772 = vand.u32 %v503, 4294901760
  %v773 = vsub.f32 %v503, %v772
  %774 = vmatpush1.msra.mxu0 %v773
  %775 = vmatprep.subr.mxu0 0.0
  %v776 = vand.u32 %v502, 4294901760
  %v777 = vsub.f32 %v502, %v776
  %778 = vmatpush1.msra.mxu0 %v777
  %779 = vmatprep.subr.mxu0 0.0
  %v780 = vand.u32 %v501, 4294901760
  %v781 = vsub.f32 %v501, %v780
  %782 = vmatpush1.msra.mxu0 %v781
  %783 = vmatprep.subr.mxu0 0.0
  %v784 = vand.u32 %v500, 4294901760
  %v785 = vsub.f32 %v500, %v784
  %786 = vmatpush1.msra.mxu0 %v785
  %787 = vmatprep.subr.mxu0 0.0
  %v788 = vand.u32 %v499, 4294901760
  %v789 = vsub.f32 %v499, %v788
  %790 = vmatpush1.msra.mxu0 %v789
  %791 = vmatprep.subr.mxu0 0.0
  %v792 = vand.u32 %v498, 4294901760
  %v793 = vsub.f32 %v498, %v792
  %794 = vmatpush1.msra.mxu0 %v793
  %795 = vmatprep.subr.mxu0 0.0
  %v796 = vand.u32 %v497, 4294901760
  %v797 = vsub.f32 %v497, %v796
  %798 = vmatpush1.msra.mxu0 %v797
  %799 = vmatprep.subr.mxu0 0.0
  %v800 = vand.u32 %v496, 4294901760
  %v801 = vsub.f32 %v496, %v800
  %802 = vmatpush1.msra.mxu0 %v801
  %803 = vmatprep.subr.mxu0 0.0
  %v804 = vand.u32 %v495, 4294901760
  %v805 = vsub.f32 %v495, %v804
  %806 = vmatpush1.msra.mxu0 %v805
  %807 = vmatprep.subr.mxu0 0.0
  %v808 = vand.u32 %v494, 4294901760
  %v809 = vsub.f32 %v494, %v808
  %810 = vmatpush1.msra.mxu0 %v809
  %811 = vmatprep.subr.mxu0 0.0
  %v812 = vand.u32 %v493, 4294901760
  %v813 = vsub.f32 %v493, %v812
  %814 = vmatpush1.msra.mxu0 %v813
  %815 = vmatprep.subr.mxu0 0.0
  %816 = vmatpush2.msra.mxu0 0.0
  %817 = vmatprep.subr.mxu0 0.0
  %818 = vmatpush2.msra.mxu0 0.0
  %819 = vmatprep.subr.mxu0 0.0
  %820 = vmatpush2.msra.mxu0 0.0
  %821 = vmatprep.subr.mxu0 0.0
  %822 = vmatpush2.msra.mxu0 0.0
  %823 = vmatprep.subr.mxu0 0.0
  %824 = vmatpush2.msra.mxu0 0.0
  %825 = vmatprep.subr.mxu0 0.0
  %826 = vmatpush2.msra.mxu0 0.0
  %827 = vmatprep.subr.mxu0 0.0
  %828 = vmatpush2.msra.mxu0 0.0
  %829 = vmatprep.subr.mxu0 0.0
  %830 = vmatpush2.msra.mxu0 0.0
  %831 = vmatprep.subr.mxu0 0.0
  %832 = vmatpush2.msra.mxu0 0.0
  %833 = vmatprep.subr.mxu0 0.0
  %834 = vmatpush2.msra.mxu0 0.0
  %835 = vmatprep.subr.mxu0 0.0
  %836 = vmatpush2.msra.mxu0 0.0
  %837 = vmatprep.subr.mxu0 0.0
  %838 = vmatpush2.msra.mxu0 0.0
  %839 = vmatprep.subr.mxu0 0.0
  %840 = vmatpush2.msra.mxu0 0.0
  %841 = vmatprep.subr.mxu0 0.0
  %842 = vmatpush2.msra.mxu0 0.0
  %843 = vmatprep.subr.mxu0 0.0
  %844 = vmatpush2.msra.mxu0 0.0
  %845 = vmatprep.subr.mxu0 0.0
  %846 = vmatpush2.msra.mxu0 0.0
  %847 = vmatprep.mubr.f32.mxu0 0.0
  %v848 = vand.u32 %v492, 4294901760
  %v849 = vsub.f32 %v492, %v848
  %850 = vmatmul.mubr.f32.gmra.mxu0 %v849
  %v851 = vpop.f32.mrf.mxu0
  %v852 = vadd.f32 %v748, %v851
  %v853 = vpop.f32.mrf.mxu0
  %854 = vdwg.mxu0
  %855 = vmatprep.subr.mxu0 0.0
  %v856 = vand.u32 %v508, 4294901760
  %857 = vmatpush1.msra.mxu0 %v856
  %858 = vmatprep.subr.mxu0 0.0
  %v859 = vand.u32 %v507, 4294901760
  %860 = vmatpush1.msra.mxu0 %v859
  %861 = vmatprep.subr.mxu0 0.0
  %v862 = vand.u32 %v506, 4294901760
  %863 = vmatpush1.msra.mxu0 %v862
  %864 = vmatprep.subr.mxu0 0.0
  %v865 = vand.u32 %v505, 4294901760
  %866 = vmatpush1.msra.mxu0 %v865
  %867 = vmatprep.subr.mxu0 0.0
  %v868 = vand.u32 %v504, 4294901760
  %869 = vmatpush1.msra.mxu0 %v868
  %870 = vmatprep.subr.mxu0 0.0
  %v871 = vand.u32 %v503, 4294901760
  %872 = vmatpush1.msra.mxu0 %v871
  %873 = vmatprep.subr.mxu0 0.0
  %v874 = vand.u32 %v502, 4294901760
  %875 = vmatpush1.msra.mxu0 %v874
  %876 = vmatprep.subr.mxu0 0.0
  %v877 = vand.u32 %v501, 4294901760
  %878 = vmatpush1.msra.mxu0 %v877
  %879 = vmatprep.subr.mxu0 0.0
  %v880 = vand.u32 %v500, 4294901760
  %881 = vmatpush1.msra.mxu0 %v880
  %882 = vmatprep.subr.mxu0 0.0
  %v883 = vand.u32 %v499, 4294901760
  %884 = vmatpush1.msra.mxu0 %v883
  %885 = vmatprep.subr.mxu0 0.0
  %v886 = vand.u32 %v498, 4294901760
  %887 = vmatpush1.msra.mxu0 %v886
  %888 = vmatprep.subr.mxu0 0.0
  %v889 = vand.u32 %v497, 4294901760
  %890 = vmatpush1.msra.mxu0 %v889
  %891 = vmatprep.subr.mxu0 0.0
  %v892 = vand.u32 %v496, 4294901760
  %893 = vmatpush1.msra.mxu0 %v892
  %894 = vmatprep.subr.mxu0 0.0
  %v895 = vand.u32 %v495, 4294901760
  %896 = vmatpush1.msra.mxu0 %v895
  %897 = vmatprep.subr.mxu0 0.0
  %v898 = vand.u32 %v494, 4294901760
  %899 = vmatpush1.msra.mxu0 %v898
  %900 = vmatprep.subr.mxu0 0.0
  %v901 = vand.u32 %v493, 4294901760
  %902 = vmatpush1.msra.mxu0 %v901
  %903 = vmatprep.subr.mxu0 0.0
  %904 = vmatpush2.msra.mxu0 0.0
  %905 = vmatprep.subr.mxu0 0.0
  %906 = vmatpush2.msra.mxu0 0.0
  %907 = vmatprep.subr.mxu0 0.0
  %908 = vmatpush2.msra.mxu0 0.0
  %909 = vmatprep.subr.mxu0 0.0
  %910 = vmatpush2.msra.mxu0 0.0
  %911 = vmatprep.subr.mxu0 0.0
  %912 = vmatpush2.msra.mxu0 0.0
  %913 = vmatprep.subr.mxu0 0.0
  %914 = vmatpush2.msra.mxu0 0.0
  %915 = vmatprep.subr.mxu0 0.0
  %916 = vmatpush2.msra.mxu0 0.0
  %917 = vmatprep.subr.mxu0 0.0
  %918 = vmatpush2.msra.mxu0 0.0
  %919 = vmatprep.subr.mxu0 0.0
  %920 = vmatpush2.msra.mxu0 0.0
  %921 = vmatprep.subr.mxu0 0.0
  %922 = vmatpush2.msra.mxu0 0.0
  %923 = vmatprep.subr.mxu0 0.0
  %924 = vmatpush2.msra.mxu0 0.0
  %925 = vmatprep.subr.mxu0 0.0
  %926 = vmatpush2.msra.mxu0 0.0
  %927 = vmatprep.subr.mxu0 0.0
  %928 = vmatpush2.msra.mxu0 0.0
  %929 = vmatprep.subr.mxu0 0.0
  %930 = vmatpush2.msra.mxu0 0.0
  %931 = vmatprep.subr.mxu0 0.0
  %932 = vmatpush2.msra.mxu0 0.0
  %933 = vmatprep.subr.mxu0 0.0
  %934 = vmatpush2.msra.mxu0 0.0
  %935 = vmatprep.mubr.f32.mxu0 0.0
  %v936 = vand.u32 %v492, 4294901760
  %v937 = vsub.f32 %v492, %v936
  %v938 = vand.u32 %v937, 4294901760
  %939 = vmatmul.mubr.f32.gmra.mxu0 %v938
  %v940 = vpop.f32.mrf.mxu0
  %v941 = vadd.f32 %v852, %v940
  %v942 = vpop.f32.mrf.mxu0
  %943 = vdwg.mxu0
  %944 = vmatprep.subr.mxu0 0.0
  %v945 = vand.u32 %v508, 4294901760
  %v946 = vsub.f32 %v508, %v945
  %v947 = vand.u32 %v946, 4294901760
  %948 = vmatpush1.msra.mxu0 %v947
  %949 = vmatprep.subr.mxu0 0.0
  %v950 = vand.u32 %v507, 4294901760
  %v951 = vsub.f32 %v507, %v950
  %v952 = vand.u32 %v951, 4294901760
  %953 = vmatpush1.msra.mxu0 %v952
  %954 = vmatprep.subr.mxu0 0.0
  %v955 = vand.u32 %v506, 4294901760
  %v956 = vsub.f32 %v506, %v955
  %v957 = vand.u32 %v956, 4294901760
  %958 = vmatpush1.msra.mxu0 %v957
  %959 = vmatprep.subr.mxu0 0.0
  %v960 = vand.u32 %v505, 4294901760
  %v961 = vsub.f32 %v505, %v960
  %v962 = vand.u32 %v961, 4294901760
  %963 = vmatpush1.msra.mxu0 %v962
  %964 = vmatprep.subr.mxu0 0.0
  %v965 = vand.u32 %v504, 4294901760
  %v966 = vsub.f32 %v504, %v965
  %v967 = vand.u32 %v966, 4294901760
  %968 = vmatpush1.msra.mxu0 %v967
  %969 = vmatprep.subr.mxu0 0.0
  %v970 = vand.u32 %v503, 4294901760
  %v971 = vsub.f32 %v503, %v970
  %v972 = vand.u32 %v971, 4294901760
  %973 = vmatpush1.msra.mxu0 %v972
  %974 = vmatprep.subr.mxu0 0.0
  %v975 = vand.u32 %v502, 4294901760
  %v976 = vsub.f32 %v502, %v975
  %v977 = vand.u32 %v976, 4294901760
  %978 = vmatpush1.msra.mxu0 %v977
  %979 = vmatprep.subr.mxu0 0.0
  %v980 = vand.u32 %v501, 4294901760
  %v981 = vsub.f32 %v501, %v980
  %v982 = vand.u32 %v981, 4294901760
  %983 = vmatpush1.msra.mxu0 %v982
  %984 = vmatprep.subr.mxu0 0.0
  %v985 = vand.u32 %v500, 4294901760
  %v986 = vsub.f32 %v500, %v985
  %v987 = vand.u32 %v986, 4294901760
  %988 = vmatpush1.msra.mxu0 %v987
  %989 = vmatprep.subr.mxu0 0.0
  %v990 = vand.u32 %v499, 4294901760
  %v991 = vsub.f32 %v499, %v990
  %v992 = vand.u32 %v991, 4294901760
  %993 = vmatpush1.msra.mxu0 %v992
  %994 = vmatprep.subr.mxu0 0.0
  %v995 = vand.u32 %v498, 4294901760
  %v996 = vsub.f32 %v498, %v995
  %v997 = vand.u32 %v996, 4294901760
  %998 = vmatpush1.msra.mxu0 %v997
  %999 = vmatprep.subr.mxu0 0.0
  %v1000 = vand.u32 %v497, 4294901760
  %v1001 = vsub.f32 %v497, %v1000
  %v1002 = vand.u32 %v1001, 4294901760
  %1003 = vmatpush1.msra.mxu0 %v1002
  %1004 = vmatprep.subr.mxu0 0.0
  %v1005 = vand.u32 %v496, 4294901760
  %v1006 = vsub.f32 %v496, %v1005
  %v1007 = vand.u32 %v1006, 4294901760
  %1008 = vmatpush1.msra.mxu0 %v1007
  %1009 = vmatprep.subr.mxu0 0.0
  %v1010 = vand.u32 %v495, 4294901760
  %v1011 = vsub.f32 %v495, %v1010
  %v1012 = vand.u32 %v1011, 4294901760
  %1013 = vmatpush1.msra.mxu0 %v1012
  %1014 = vmatprep.subr.mxu0 0.0
  %v1015 = vand.u32 %v494, 4294901760
  %v1016 = vsub.f32 %v494, %v1015
  %v1017 = vand.u32 %v1016, 4294901760
  %1018 = vmatpush1.msra.mxu0 %v1017
  %1019 = vmatprep.subr.mxu0 0.0
  %v1020 = vand.u32 %v493, 4294901760
  %v1021 = vsub.f32 %v493, %v1020
  %v1022 = vand.u32 %v1021, 4294901760
  %1023 = vmatpush1.msra.mxu0 %v1022
  %1024 = vmatprep.subr.mxu0 0.0
  %1025 = vmatpush2.msra.mxu0 0.0
  %1026 = vmatprep.subr.mxu0 0.0
  %1027 = vmatpush2.msra.mxu0 0.0
  %1028 = vmatprep.subr.mxu0 0.0
  %1029 = vmatpush2.msra.mxu0 0.0
  %1030 = vmatprep.subr.mxu0 0.0
  %1031 = vmatpush2.msra.mxu0 0.0
  %1032 = vmatprep.subr.mxu0 0.0
  %1033 = vmatpush2.msra.mxu0 0.0
  %1034 = vmatprep.subr.mxu0 0.0
  %1035 = vmatpush2.msra.mxu0 0.0
  %1036 = vmatprep.subr.mxu0 0.0
  %1037 = vmatpush2.msra.mxu0 0.0
  %1038 = vmatprep.subr.mxu0 0.0
  %1039 = vmatpush2.msra.mxu0 0.0
  %1040 = vmatprep.subr.mxu0 0.0
  %1041 = vmatpush2.msra.mxu0 0.0
  %1042 = vmatprep.subr.mxu0 0.0
  %1043 = vmatpush2.msra.mxu0 0.0
  %1044 = vmatprep.subr.mxu0 0.0
  %1045 = vmatpush2.msra.mxu0 0.0
  %1046 = vmatprep.subr.mxu0 0.0
  %1047 = vmatpush2.msra.mxu0 0.0
  %1048 = vmatprep.subr.mxu0 0.0
  %1049 = vmatpush2.msra.mxu0 0.0
  %1050 = vmatprep.subr.mxu0 0.0
  %1051 = vmatpush2.msra.mxu0 0.0
  %1052 = vmatprep.subr.mxu0 0.0
  %1053 = vmatpush2.msra.mxu0 0.0
  %1054 = vmatprep.subr.mxu0 0.0
  %1055 = vmatpush2.msra.mxu0 0.0
  %1056 = vmatprep.mubr.f32.mxu0 0.0
  %v1057 = vand.u32 %v492, 4294901760
  %1058 = vmatmul.mubr.f32.gmra.mxu0 %v1057
  %v1059 = vpop.f32.mrf.mxu0
  %v1060 = vadd.f32 %v941, %v1059
  %v1061 = vpop.f32.mrf.mxu0
  %1062 = vdwg.mxu0
  %1063 = vmatprep.subr.mxu0 0.0
  %v1064 = vand.u32 %v508, 4294901760
  %1065 = vmatpush1.msra.mxu0 %v1064
  %1066 = vmatprep.subr.mxu0 0.0
  %v1067 = vand.u32 %v507, 4294901760
  %1068 = vmatpush1.msra.mxu0 %v1067
  %1069 = vmatprep.subr.mxu0 0.0
  %v1070 = vand.u32 %v506, 4294901760
  %1071 = vmatpush1.msra.mxu0 %v1070
  %1072 = vmatprep.subr.mxu0 0.0
  %v1073 = vand.u32 %v505, 4294901760
  %1074 = vmatpush1.msra.mxu0 %v1073
  %1075 = vmatprep.subr.mxu0 0.0
  %v1076 = vand.u32 %v504, 4294901760
  %1077 = vmatpush1.msra.mxu0 %v1076
  %1078 = vmatprep.subr.mxu0 0.0
  %v1079 = vand.u32 %v503, 4294901760
  %1080 = vmatpush1.msra.mxu0 %v1079
  %1081 = vmatprep.subr.mxu0 0.0
  %v1082 = vand.u32 %v502, 4294901760
  %1083 = vmatpush1.msra.mxu0 %v1082
  %1084 = vmatprep.subr.mxu0 0.0
  %v1085 = vand.u32 %v501, 4294901760
  %1086 = vmatpush1.msra.mxu0 %v1085
  %1087 = vmatprep.subr.mxu0 0.0
  %v1088 = vand.u32 %v500, 4294901760
  %1089 = vmatpush1.msra.mxu0 %v1088
  %1090 = vmatprep.subr.mxu0 0.0
  %v1091 = vand.u32 %v499, 4294901760
  %1092 = vmatpush1.msra.mxu0 %v1091
  %1093 = vmatprep.subr.mxu0 0.0
  %v1094 = vand.u32 %v498, 4294901760
  %1095 = vmatpush1.msra.mxu0 %v1094
  %1096 = vmatprep.subr.mxu0 0.0
  %v1097 = vand.u32 %v497, 4294901760
  %1098 = vmatpush1.msra.mxu0 %v1097
  %1099 = vmatprep.subr.mxu0 0.0
  %v1100 = vand.u32 %v496, 4294901760
  %1101 = vmatpush1.msra.mxu0 %v1100
  %1102 = vmatprep.subr.mxu0 0.0
  %v1103 = vand.u32 %v495, 4294901760
  %1104 = vmatpush1.msra.mxu0 %v1103
  %1105 = vmatprep.subr.mxu0 0.0
  %v1106 = vand.u32 %v494, 4294901760
  %1107 = vmatpush1.msra.mxu0 %v1106
  %1108 = vmatprep.subr.mxu0 0.0
  %v1109 = vand.u32 %v493, 4294901760
  %1110 = vmatpush1.msra.mxu0 %v1109
  %1111 = vmatprep.subr.mxu0 0.0
  %1112 = vmatpush2.msra.mxu0 0.0
  %1113 = vmatprep.subr.mxu0 0.0
  %1114 = vmatpush2.msra.mxu0 0.0
  %1115 = vmatprep.subr.mxu0 0.0
  %1116 = vmatpush2.msra.mxu0 0.0
  %1117 = vmatprep.subr.mxu0 0.0
  %1118 = vmatpush2.msra.mxu0 0.0
  %1119 = vmatprep.subr.mxu0 0.0
  %1120 = vmatpush2.msra.mxu0 0.0
  %1121 = vmatprep.subr.mxu0 0.0
  %1122 = vmatpush2.msra.mxu0 0.0
  %1123 = vmatprep.subr.mxu0 0.0
  %1124 = vmatpush2.msra.mxu0 0.0
  %1125 = vmatprep.subr.mxu0 0.0
  %1126 = vmatpush2.msra.mxu0 0.0
  %1127 = vmatprep.subr.mxu0 0.0
  %1128 = vmatpush2.msra.mxu0 0.0
  %1129 = vmatprep.subr.mxu0 0.0
  %1130 = vmatpush2.msra.mxu0 0.0
  %1131 = vmatprep.subr.mxu0 0.0
  %1132 = vmatpush2.msra.mxu0 0.0
  %1133 = vmatprep.subr.mxu0 0.0
  %1134 = vmatpush2.msra.mxu0 0.0
  %1135 = vmatprep.subr.mxu0 0.0
  %1136 = vmatpush2.msra.mxu0 0.0
  %1137 = vmatprep.subr.mxu0 0.0
  %1138 = vmatpush2.msra.mxu0 0.0
  %1139 = vmatprep.subr.mxu0 0.0
  %1140 = vmatpush2.msra.mxu0 0.0
  %1141 = vmatprep.subr.mxu0 0.0
  %1142 = vmatpush2.msra.mxu0 0.0
  %1143 = vmatprep.mubr.f32.mxu0 0.0
  %v1144 = vand.u32 %v492, 4294901760
  %1145 = vmatmul.mubr.f32.gmra.mxu0 %v1144
  %v1146 = vpop.f32.mrf.mxu0
  %v1147 = vadd.f32 %v1060, %v1146
  %v1148 = vpop.f32.mrf.mxu0
  %1149 = vdwg.mxu0
  %v1150 = vmul.f32 %v491, %v1147
  %1151 = vmatprep.subr.mxu0 0.0
  %1152 = vmatpush1.msra.mxu0 0.0
  %1153 = vmatprep.subr.mxu0 0.0
  %1154 = vmatpush1.msra.mxu0 0.0
  %1155 = vmatprep.subr.mxu0 0.0
  %1156 = vmatpush1.msra.mxu0 0.0
  %1157 = vmatprep.subr.mxu0 0.0
  %1158 = vmatpush1.msra.mxu0 0.0
  %1159 = vmatprep.subr.mxu0 0.0
  %1160 = vmatpush1.msra.mxu0 0.0
  %1161 = vmatprep.subr.mxu0 0.0
  %1162 = vmatpush1.msra.mxu0 0.0
  %1163 = vmatprep.subr.mxu0 0.0
  %1164 = vmatpush1.msra.mxu0 0.0
  %1165 = vmatprep.subr.mxu0 0.0
  %1166 = vmatpush1.msra.mxu0 0.0
  %1167 = vmatprep.subr.mxu0 0.0
  %1168 = vmatpush1.msra.mxu0 0.0
  %1169 = vmatprep.subr.mxu0 0.0
  %1170 = vmatpush1.msra.mxu0 0.0
  %1171 = vmatprep.subr.mxu0 0.0
  %1172 = vmatpush1.msra.mxu0 0.0
  %1173 = vmatprep.subr.mxu0 0.0
  %1174 = vmatpush1.msra.mxu0 0.0
  %1175 = vmatprep.subr.mxu0 0.0
  %1176 = vmatpush1.msra.mxu0 0.0
  %1177 = vmatprep.subr.mxu0 0.0
  %1178 = vmatpush1.msra.mxu0 0.0
  %1179 = vmatprep.subr.mxu0 0.0
  %1180 = vmatpush1.msra.mxu0 0.0
  %1181 = vmatprep.subr.mxu0 0.0
  %v1182 = vand.u32 %v1150, 4294901760
  %1183 = vmatpush1.msra.mxu0 %v1182
  %1184 = vmatprep.subr.mxu0 0.0
  %1185 = vmatpush2.msra.mxu0 0.0
  %1186 = vmatprep.subr.mxu0 0.0
  %1187 = vmatpush2.msra.mxu0 0.0
  %1188 = vmatprep.subr.mxu0 0.0
  %1189 = vmatpush2.msra.mxu0 0.0
  %1190 = vmatprep.subr.mxu0 0.0
  %1191 = vmatpush2.msra.mxu0 0.0
  %1192 = vmatprep.subr.mxu0 0.0
  %1193 = vmatpush2.msra.mxu0 0.0
  %1194 = vmatprep.subr.mxu0 0.0
  %1195 = vmatpush2.msra.mxu0 0.0
  %1196 = vmatprep.subr.mxu0 0.0
  %1197 = vmatpush2.msra.mxu0 0.0
  %1198 = vmatprep.subr.mxu0 0.0
  %1199 = vmatpush2.msra.mxu0 0.0
  %1200 = vmatprep.subr.mxu0 0.0
  %1201 = vmatpush2.msra.mxu0 0.0
  %1202 = vmatprep.subr.mxu0 0.0
  %1203 = vmatpush2.msra.mxu0 0.0
  %1204 = vmatprep.subr.mxu0 0.0
  %1205 = vmatpush2.msra.mxu0 0.0
  %1206 = vmatprep.subr.mxu0 0.0
  %1207 = vmatpush2.msra.mxu0 0.0
  %1208 = vmatprep.subr.mxu0 0.0
  %1209 = vmatpush2.msra.mxu0 0.0
  %1210 = vmatprep.subr.mxu0 0.0
  %1211 = vmatpush2.msra.mxu0 0.0
  %1212 = vmatprep.subr.mxu0 0.0
  %1213 = vmatpush2.msra.mxu0 0.0
  %1214 = vmatprep.subr.mxu0 0.0
  %1215 = vmatpush2.msra.mxu0 0.0
  %1216 = vmatprep.mubr.f32.mxu0 0.0
  %v1217 = vand.u32 %v33, 4294901760
  %v1218 = vsub.f32 %v33, %v1217
  %v1219 = vand.u32 %v1218, 4294901760
  %v1220 = vsub.f32 %v1218, %v1219
  %v1221 = vand.u32 %v1220, 4294901760
  %1222 = vmatmul.mubr.f32.gmra.mxu0 %v1221
  %v1223 = vpop.f32.mrf.mxu0
  %v1224 = vadd.f32 %v31, %v1223
  %v1225 = vpop.f32.mrf.mxu0
  %1226 = vdwg.mxu0
  %1227 = vmatprep.subr.mxu0 0.0
  %1228 = vmatpush1.msra.mxu0 0.0
  %1229 = vmatprep.subr.mxu0 0.0
  %1230 = vmatpush1.msra.mxu0 0.0
  %1231 = vmatprep.subr.mxu0 0.0
  %1232 = vmatpush1.msra.mxu0 0.0
  %1233 = vmatprep.subr.mxu0 0.0
  %1234 = vmatpush1.msra.mxu0 0.0
  %1235 = vmatprep.subr.mxu0 0.0
  %1236 = vmatpush1.msra.mxu0 0.0
  %1237 = vmatprep.subr.mxu0 0.0
  %1238 = vmatpush1.msra.mxu0 0.0
  %1239 = vmatprep.subr.mxu0 0.0
  %1240 = vmatpush1.msra.mxu0 0.0
  %1241 = vmatprep.subr.mxu0 0.0
  %1242 = vmatpush1.msra.mxu0 0.0
  %1243 = vmatprep.subr.mxu0 0.0
  %1244 = vmatpush1.msra.mxu0 0.0
  %1245 = vmatprep.subr.mxu0 0.0
  %1246 = vmatpush1.msra.mxu0 0.0
  %1247 = vmatprep.subr.mxu0 0.0
  %1248 = vmatpush1.msra.mxu0 0.0
  %1249 = vmatprep.subr.mxu0 0.0
  %1250 = vmatpush1.msra.mxu0 0.0
  %1251 = vmatprep.subr.mxu0 0.0
  %1252 = vmatpush1.msra.mxu0 0.0
  %1253 = vmatprep.subr.mxu0 0.0
  %1254 = vmatpush1.msra.mxu0 0.0
  %1255 = vmatprep.subr.mxu0 0.0
  %1256 = vmatpush1.msra.mxu0 0.0
  %1257 = vmatprep.subr.mxu0 0.0
  %v1258 = vand.u32 %v1150, 4294901760
  %v1259 = vsub.f32 %v1150, %v1258
  %v1260 = vand.u32 %v1259, 4294901760
  %v1261 = vsub.f32 %v1259, %v1260
  %v1262 = vand.u32 %v1261, 4294901760
  %1263 = vmatpush1.msra.mxu0 %v1262
  %1264 = vmatprep.subr.mxu0 0.0
  %1265 = vmatpush2.msra.mxu0 0.0
  %1266 = vmatprep.subr.mxu0 0.0
  %1267 = vmatpush2.msra.mxu0 0.0
  %1268 = vmatprep.subr.mxu0 0.0
  %1269 = vmatpush2.msra.mxu0 0.0
  %1270 = vmatprep.subr.mxu0 0.0
  %1271 = vmatpush2.msra.mxu0 0.0
  %1272 = vmatprep.subr.mxu0 0.0
  %1273 = vmatpush2.msra.mxu0 0.0
  %1274 = vmatprep.subr.mxu0 0.0
  %1275 = vmatpush2.msra.mxu0 0.0
  %1276 = vmatprep.subr.mxu0 0.0
  %1277 = vmatpush2.msra.mxu0 0.0
  %1278 = vmatprep.subr.mxu0 0.0
  %1279 = vmatpush2.msra.mxu0 0.0
  %1280 = vmatprep.subr.mxu0 0.0
  %1281 = vmatpush2.msra.mxu0 0.0
  %1282 = vmatprep.subr.mxu0 0.0
  %1283 = vmatpush2.msra.mxu0 0.0
  %1284 = vmatprep.subr.mxu0 0.0
  %1285 = vmatpush2.msra.mxu0 0.0
  %1286 = vmatprep.subr.mxu0 0.0
  %1287 = vmatpush2.msra.mxu0 0.0
  %1288 = vmatprep.subr.mxu0 0.0
  %1289 = vmatpush2.msra.mxu0 0.0
  %1290 = vmatprep.subr.mxu0 0.0
  %1291 = vmatpush2.msra.mxu0 0.0
  %1292 = vmatprep.subr.mxu0 0.0
  %1293 = vmatpush2.msra.mxu0 0.0
  %1294 = vmatprep.subr.mxu0 0.0
  %1295 = vmatpush2.msra.mxu0 0.0
  %1296 = vmatprep.mubr.f32.mxu0 0.0
  %v1297 = vand.u32 %v33, 4294901760
  %1298 = vmatmul.mubr.f32.gmra.mxu0 %v1297
  %v1299 = vpop.f32.mrf.mxu0
  %v1300 = vadd.f32 %v1224, %v1299
  %v1301 = vpop.f32.mrf.mxu0
  %1302 = vdwg.mxu0
  %1303 = vmatprep.subr.mxu0 0.0
  %1304 = vmatpush1.msra.mxu0 0.0
  %1305 = vmatprep.subr.mxu0 0.0
  %1306 = vmatpush1.msra.mxu0 0.0
  %1307 = vmatprep.subr.mxu0 0.0
  %1308 = vmatpush1.msra.mxu0 0.0
  %1309 = vmatprep.subr.mxu0 0.0
  %1310 = vmatpush1.msra.mxu0 0.0
  %1311 = vmatprep.subr.mxu0 0.0
  %1312 = vmatpush1.msra.mxu0 0.0
  %1313 = vmatprep.subr.mxu0 0.0
  %1314 = vmatpush1.msra.mxu0 0.0
  %1315 = vmatprep.subr.mxu0 0.0
  %1316 = vmatpush1.msra.mxu0 0.0
  %1317 = vmatprep.subr.mxu0 0.0
  %1318 = vmatpush1.msra.mxu0 0.0
  %1319 = vmatprep.subr.mxu0 0.0
  %1320 = vmatpush1.msra.mxu0 0.0
  %1321 = vmatprep.subr.mxu0 0.0
  %1322 = vmatpush1.msra.mxu0 0.0
  %1323 = vmatprep.subr.mxu0 0.0
  %1324 = vmatpush1.msra.mxu0 0.0
  %1325 = vmatprep.subr.mxu0 0.0
  %1326 = vmatpush1.msra.mxu0 0.0
  %1327 = vmatprep.subr.mxu0 0.0
  %1328 = vmatpush1.msra.mxu0 0.0
  %1329 = vmatprep.subr.mxu0 0.0
  %1330 = vmatpush1.msra.mxu0 0.0
  %1331 = vmatprep.subr.mxu0 0.0
  %1332 = vmatpush1.msra.mxu0 0.0
  %1333 = vmatprep.subr.mxu0 0.0
  %v1334 = vand.u32 %v1150, 4294901760
  %v1335 = vsub.f32 %v1150, %v1334
  %1336 = vmatpush1.msra.mxu0 %v1335
  %1337 = vmatprep.subr.mxu0 0.0
  %1338 = vmatpush2.msra.mxu0 0.0
  %1339 = vmatprep.subr.mxu0 0.0
  %1340 = vmatpush2.msra.mxu0 0.0
  %1341 = vmatprep.subr.mxu0 0.0
  %1342 = vmatpush2.msra.mxu0 0.0
  %1343 = vmatprep.subr.mxu0 0.0
  %1344 = vmatpush2.msra.mxu0 0.0
  %1345 = vmatprep.subr.mxu0 0.0
  %1346 = vmatpush2.msra.mxu0 0.0
  %1347 = vmatprep.subr.mxu0 0.0
  %1348 = vmatpush2.msra.mxu0 0.0
  %1349 = vmatprep.subr.mxu0 0.0
  %1350 = vmatpush2.msra.mxu0 0.0
  %1351 = vmatprep.subr.mxu0 0.0
  %1352 = vmatpush2.msra.mxu0 0.0
  %1353 = vmatprep.subr.mxu0 0.0
  %1354 = vmatpush2.msra.mxu0 0.0
  %1355 = vmatprep.subr.mxu0 0.0
  %1356 = vmatpush2.msra.mxu0 0.0
  %1357 = vmatprep.subr.mxu0 0.0
  %1358 = vmatpush2.msra.mxu0 0.0
  %1359 = vmatprep.subr.mxu0 0.0
  %1360 = vmatpush2.msra.mxu0 0.0
  %1361 = vmatprep.subr.mxu0 0.0
  %1362 = vmatpush2.msra.mxu0 0.0
  %1363 = vmatprep.subr.mxu0 0.0
  %1364 = vmatpush2.msra.mxu0 0.0
  %1365 = vmatprep.subr.mxu0 0.0
  %1366 = vmatpush2.msra.mxu0 0.0
  %1367 = vmatprep.subr.mxu0 0.0
  %1368 = vmatpush2.msra.mxu0 0.0
  %1369 = vmatprep.mubr.f32.mxu0 0.0
  %v1370 = vand.u32 %v33, 4294901760
  %v1371 = vsub.f32 %v33, %v1370
  %1372 = vmatmul.mubr.f32.gmra.mxu0 %v1371
  %v1373 = vpop.f32.mrf.mxu0
  %v1374 = vadd.f32 %v1300, %v1373
  %v1375 = vpop.f32.mrf.mxu0
  %1376 = vdwg.mxu0
  %1377 = vmatprep.subr.mxu0 0.0
  %1378 = vmatpush1.msra.mxu0 0.0
  %1379 = vmatprep.subr.mxu0 0.0
  %1380 = vmatpush1.msra.mxu0 0.0
  %1381 = vmatprep.subr.mxu0 0.0
  %1382 = vmatpush1.msra.mxu0 0.0
  %1383 = vmatprep.subr.mxu0 0.0
  %1384 = vmatpush1.msra.mxu0 0.0
  %1385 = vmatprep.subr.mxu0 0.0
  %1386 = vmatpush1.msra.mxu0 0.0
  %1387 = vmatprep.subr.mxu0 0.0
  %1388 = vmatpush1.msra.mxu0 0.0
  %1389 = vmatprep.subr.mxu0 0.0
  %1390 = vmatpush1.msra.mxu0 0.0
  %1391 = vmatprep.subr.mxu0 0.0
  %1392 = vmatpush1.msra.mxu0 0.0
  %1393 = vmatprep.subr.mxu0 0.0
  %1394 = vmatpush1.msra.mxu0 0.0
  %1395 = vmatprep.subr.mxu0 0.0
  %1396 = vmatpush1.msra.mxu0 0.0
  %1397 = vmatprep.subr.mxu0 0.0
  %1398 = vmatpush1.msra.mxu0 0.0
  %1399 = vmatprep.subr.mxu0 0.0
  %1400 = vmatpush1.msra.mxu0 0.0
  %1401 = vmatprep.subr.mxu0 0.0
  %1402 = vmatpush1.msra.mxu0 0.0
  %1403 = vmatprep.subr.mxu0 0.0
  %1404 = vmatpush1.msra.mxu0 0.0
  %1405 = vmatprep.subr.mxu0 0.0
  %1406 = vmatpush1.msra.mxu0 0.0
  %1407 = vmatprep.subr.mxu0 0.0
  %v1408 = vand.u32 %v1150, 4294901760
  %1409 = vmatpush1.msra.mxu0 %v1408
  %1410 = vmatprep.subr.mxu0 0.0
  %1411 = vmatpush2.msra.mxu0 0.0
  %1412 = vmatprep.subr.mxu0 0.0
  %1413 = vmatpush2.msra.mxu0 0.0
  %1414 = vmatprep.subr.mxu0 0.0
  %1415 = vmatpush2.msra.mxu0 0.0
  %1416 = vmatprep.subr.mxu0 0.0
  %1417 = vmatpush2.msra.mxu0 0.0
  %1418 = vmatprep.subr.mxu0 0.0
  %1419 = vmatpush2.msra.mxu0 0.0
  %1420 = vmatprep.subr.mxu0 0.0
  %1421 = vmatpush2.msra.mxu0 0.0
  %1422 = vmatprep.subr.mxu0 0.0
  %1423 = vmatpush2.msra.mxu0 0.0
  %1424 = vmatprep.subr.mxu0 0.0
  %1425 = vmatpush2.msra.mxu0 0.0
  %1426 = vmatprep.subr.mxu0 0.0
  %1427 = vmatpush2.msra.mxu0 0.0
  %1428 = vmatprep.subr.mxu0 0.0
  %1429 = vmatpush2.msra.mxu0 0.0
  %1430 = vmatprep.subr.mxu0 0.0
  %1431 = vmatpush2.msra.mxu0 0.0
  %1432 = vmatprep.subr.mxu0 0.0
  %1433 = vmatpush2.msra.mxu0 0.0
  %1434 = vmatprep.subr.mxu0 0.0
  %1435 = vmatpush2.msra.mxu0 0.0
  %1436 = vmatprep.subr.mxu0 0.0
  %1437 = vmatpush2.msra.mxu0 0.0
  %1438 = vmatprep.subr.mxu0 0.0
  %1439 = vmatpush2.msra.mxu0 0.0
  %1440 = vmatprep.subr.mxu0 0.0
  %1441 = vmatpush2.msra.mxu0 0.0
  %1442 = vmatprep.mubr.f32.mxu0 0.0
  %v1443 = vand.u32 %v33, 4294901760
  %v1444 = vsub.f32 %v33, %v1443
  %v1445 = vand.u32 %v1444, 4294901760
  %1446 = vmatmul.mubr.f32.gmra.mxu0 %v1445
  %v1447 = vpop.f32.mrf.mxu0
  %v1448 = vadd.f32 %v1374, %v1447
  %v1449 = vpop.f32.mrf.mxu0
  %1450 = vdwg.mxu0
  %1451 = vmatprep.subr.mxu0 0.0
  %1452 = vmatpush1.msra.mxu0 0.0
  %1453 = vmatprep.subr.mxu0 0.0
  %1454 = vmatpush1.msra.mxu0 0.0
  %1455 = vmatprep.subr.mxu0 0.0
  %1456 = vmatpush1.msra.mxu0 0.0
  %1457 = vmatprep.subr.mxu0 0.0
  %1458 = vmatpush1.msra.mxu0 0.0
  %1459 = vmatprep.subr.mxu0 0.0
  %1460 = vmatpush1.msra.mxu0 0.0
  %1461 = vmatprep.subr.mxu0 0.0
  %1462 = vmatpush1.msra.mxu0 0.0
  %1463 = vmatprep.subr.mxu0 0.0
  %1464 = vmatpush1.msra.mxu0 0.0
  %1465 = vmatprep.subr.mxu0 0.0
  %1466 = vmatpush1.msra.mxu0 0.0
  %1467 = vmatprep.subr.mxu0 0.0
  %1468 = vmatpush1.msra.mxu0 0.0
  %1469 = vmatprep.subr.mxu0 0.0
  %1470 = vmatpush1.msra.mxu0 0.0
  %1471 = vmatprep.subr.mxu0 0.0
  %1472 = vmatpush1.msra.mxu0 0.0
  %1473 = vmatprep.subr.mxu0 0.0
  %1474 = vmatpush1.msra.mxu0 0.0
  %1475 = vmatprep.subr.mxu0 0.0
  %1476 = vmatpush1.msra.mxu0 0.0
  %1477 = vmatprep.subr.mxu0 0.0
  %1478 = vmatpush1.msra.mxu0 0.0
  %1479 = vmatprep.subr.mxu0 0.0
  %1480 = vmatpush1.msra.mxu0 0.0
  %1481 = vmatprep.subr.mxu0 0.0
  %v1482 = vand.u32 %v1150, 4294901760
  %v1483 = vsub.f32 %v1150, %v1482
  %v1484 = vand.u32 %v1483, 4294901760
  %1485 = vmatpush1.msra.mxu0 %v1484
  %1486 = vmatprep.subr.mxu0 0.0
  %1487 = vmatpush2.msra.mxu0 0.0
  %1488 = vmatprep.subr.mxu0 0.0
  %1489 = vmatpush2.msra.mxu0 0.0
  %1490 = vmatprep.subr.mxu0 0.0
  %1491 = vmatpush2.msra.mxu0 0.0
  %1492 = vmatprep.subr.mxu0 0.0
  %1493 = vmatpush2.msra.mxu0 0.0
  %1494 = vmatprep.subr.mxu0 0.0
  %1495 = vmatpush2.msra.mxu0 0.0
  %1496 = vmatprep.subr.mxu0 0.0
  %1497 = vmatpush2.msra.mxu0 0.0
  %1498 = vmatprep.subr.mxu0 0.0
  %1499 = vmatpush2.msra.mxu0 0.0
  %1500 = vmatprep.subr.mxu0 0.0
  %1501 = vmatpush2.msra.mxu0 0.0
  %1502 = vmatprep.subr.mxu0 0.0
  %1503 = vmatpush2.msra.mxu0 0.0
  %1504 = vmatprep.subr.mxu0 0.0
  %1505 = vmatpush2.msra.mxu0 0.0
  %1506 = vmatprep.subr.mxu0 0.0
  %1507 = vmatpush2.msra.mxu0 0.0
  %1508 = vmatprep.subr.mxu0 0.0
  %1509 = vmatpush2.msra.mxu0 0.0
  %1510 = vmatprep.subr.mxu0 0.0
  %1511 = vmatpush2.msra.mxu0 0.0
  %1512 = vmatprep.subr.mxu0 0.0
  %1513 = vmatpush2.msra.mxu0 0.0
  %1514 = vmatprep.subr.mxu0 0.0
  %1515 = vmatpush2.msra.mxu0 0.0
  %1516 = vmatprep.subr.mxu0 0.0
  %1517 = vmatpush2.msra.mxu0 0.0
  %1518 = vmatprep.mubr.f32.mxu0 0.0
  %v1519 = vand.u32 %v33, 4294901760
  %1520 = vmatmul.mubr.f32.gmra.mxu0 %v1519
  %v1521 = vpop.f32.mrf.mxu0
  %v1522 = vadd.f32 %v1448, %v1521
  %v1523 = vpop.f32.mrf.mxu0
  %1524 = vdwg.mxu0
  %1525 = vmatprep.subr.mxu0 0.0
  %1526 = vmatpush1.msra.mxu0 0.0
  %1527 = vmatprep.subr.mxu0 0.0
  %1528 = vmatpush1.msra.mxu0 0.0
  %1529 = vmatprep.subr.mxu0 0.0
  %1530 = vmatpush1.msra.mxu0 0.0
  %1531 = vmatprep.subr.mxu0 0.0
  %1532 = vmatpush1.msra.mxu0 0.0
  %1533 = vmatprep.subr.mxu0 0.0
  %1534 = vmatpush1.msra.mxu0 0.0
  %1535 = vmatprep.subr.mxu0 0.0
  %1536 = vmatpush1.msra.mxu0 0.0
  %1537 = vmatprep.subr.mxu0 0.0
  %1538 = vmatpush1.msra.mxu0 0.0
  %1539 = vmatprep.subr.mxu0 0.0
  %1540 = vmatpush1.msra.mxu0 0.0
  %1541 = vmatprep.subr.mxu0 0.0
  %1542 = vmatpush1.msra.mxu0 0.0
  %1543 = vmatprep.subr.mxu0 0.0
  %1544 = vmatpush1.msra.mxu0 0.0
  %1545 = vmatprep.subr.mxu0 0.0
  %1546 = vmatpush1.msra.mxu0 0.0
  %1547 = vmatprep.subr.mxu0 0.0
  %1548 = vmatpush1.msra.mxu0 0.0
  %1549 = vmatprep.subr.mxu0 0.0
  %1550 = vmatpush1.msra.mxu0 0.0
  %1551 = vmatprep.subr.mxu0 0.0
  %1552 = vmatpush1.msra.mxu0 0.0
  %1553 = vmatprep.subr.mxu0 0.0
  %1554 = vmatpush1.msra.mxu0 0.0
  %1555 = vmatprep.subr.mxu0 0.0
  %v1556 = vand.u32 %v1150, 4294901760
  %1557 = vmatpush1.msra.mxu0 %v1556
  %1558 = vmatprep.subr.mxu0 0.0
  %1559 = vmatpush2.msra.mxu0 0.0
  %1560 = vmatprep.subr.mxu0 0.0
  %1561 = vmatpush2.msra.mxu0 0.0
  %1562 = vmatprep.subr.mxu0 0.0
  %1563 = vmatpush2.msra.mxu0 0.0
  %1564 = vmatprep.subr.mxu0 0.0
  %1565 = vmatpush2.msra.mxu0 0.0
  %1566 = vmatprep.subr.mxu0 0.0
  %1567 = vmatpush2.msra.mxu0 0.0
  %1568 = vmatprep.subr.mxu0 0.0
  %1569 = vmatpush2.msra.mxu0 0.0
  %1570 = vmatprep.subr.mxu0 0.0
  %1571 = vmatpush2.msra.mxu0 0.0
  %1572 = vmatprep.subr.mxu0 0.0
  %1573 = vmatpush2.msra.mxu0 0.0
  %1574 = vmatprep.subr.mxu0 0.0
  %1575 = vmatpush2.msra.mxu0 0.0
  %1576 = vmatprep.subr.mxu0 0.0
  %1577 = vmatpush2.msra.mxu0 0.0
  %1578 = vmatprep.subr.mxu0 0.0
  %1579 = vmatpush2.msra.mxu0 0.0
  %1580 = vmatprep.subr.mxu0 0.0
  %1581 = vmatpush2.msra.mxu0 0.0
  %1582 = vmatprep.subr.mxu0 0.0
  %1583 = vmatpush2.msra.mxu0 0.0
  %1584 = vmatprep.subr.mxu0 0.0
  %1585 = vmatpush2.msra.mxu0 0.0
  %1586 = vmatprep.subr.mxu0 0.0
  %1587 = vmatpush2.msra.mxu0 0.0
  %1588 = vmatprep.subr.mxu0 0.0
  %1589 = vmatpush2.msra.mxu0 0.0
  %1590 = vmatprep.mubr.f32.mxu0 0.0
  %v1591 = vand.u32 %v33, 4294901760
  %1592 = vmatmul.mubr.f32.gmra.mxu0 %v1591
  %v1593 = vpop.f32.mrf.mxu0
  %v1594 = vadd.f32 %v1522, %v1593
  %v1595 = vpop.f32.mrf.mxu0
  %1596 = vdwg.mxu0
  %1597 = vadd.xlane.f32.xlu0 %v1594
  %v1598 = vpop.xlane.xlu0 %1597
  %v1599 = vmul.f32 %v1598, 0.055555556
  %v1600 = vmul.f32 %v1594, %v1594
  %1601 = vadd.xlane.f32.xlu0 %v1600
  %v1602 = vpop.xlane.xlu0 %1601
  %v1603 = vmul.f32 %v1602, 0.055555556
  %v1604 = vmul.f32 %v1599, %v1599
  %v1605 = vsub.f32 %v1603, %v1604
  %v1606 = vadd.f32 %v1605, 1e-05
  %v1607 = vrsqrt.pop %v1606
  %v1608 = vsub.f32 %v1594, %v1599
  %v1609 = vmul.f32 %v1608, %v1607
  %v1610 = vlaneseq
  %v1611 = vshrl.u32 %v1610, 7
  %v1612 = vsub.s32 2, %v1611
  %v1613 = vrot.slane %v16, %v1612
  %v1614 = vmul.f32 %v1609, %v1613
  %1615 = vmatprep.subr.mxu0 0.0
  %1616 = vmatpush1.msra.mxu0 0.0
  %1617 = vmatprep.subr.mxu0 0.0
  %1618 = vmatpush1.msra.mxu0 0.0
  %1619 = vmatprep.subr.mxu0 0.0
  %1620 = vmatpush1.msra.mxu0 0.0
  %1621 = vmatprep.subr.mxu0 0.0
  %1622 = vmatpush1.msra.mxu0 0.0
  %1623 = vmatprep.subr.mxu0 0.0
  %1624 = vmatpush1.msra.mxu0 0.0
  %1625 = vmatprep.subr.mxu0 0.0
  %1626 = vmatpush1.msra.mxu0 0.0
  %1627 = vmatprep.subr.mxu0 0.0
  %1628 = vmatpush1.msra.mxu0 0.0
  %1629 = vmatprep.subr.mxu0 0.0
  %1630 = vmatpush1.msra.mxu0 0.0
  %1631 = vmatprep.subr.mxu0 0.0
  %1632 = vmatpush1.msra.mxu0 0.0
  %1633 = vmatprep.subr.mxu0 0.0
  %1634 = vmatpush1.msra.mxu0 0.0
  %1635 = vmatprep.subr.mxu0 0.0
  %1636 = vmatpush1.msra.mxu0 0.0
  %1637 = vmatprep.subr.mxu0 0.0
  %1638 = vmatpush1.msra.mxu0 0.0
  %1639 = vmatprep.subr.mxu0 0.0
  %1640 = vmatpush1.msra.mxu0 0.0
  %1641 = vmatprep.subr.mxu0 0.0
  %1642 = vmatpush1.msra.mxu0 0.0
  %1643 = vmatprep.subr.mxu0 0.0
  %1644 = vmatpush1.msra.mxu0 0.0
  %1645 = vmatprep.subr.mxu0 0.0
  %v1646 = vand.u32 %v1614, 4294901760
  %1647 = vmatpush1.msra.mxu0 %v1646
  %1648 = vmatprep.subr.mxu0 0.0
  %1649 = vmatpush2.msra.mxu0 0.0
  %1650 = vmatprep.subr.mxu0 0.0
  %1651 = vmatpush2.msra.mxu0 0.0
  %1652 = vmatprep.subr.mxu0 0.0
  %1653 = vmatpush2.msra.mxu0 0.0
  %1654 = vmatprep.subr.mxu0 0.0
  %1655 = vmatpush2.msra.mxu0 0.0
  %1656 = vmatprep.subr.mxu0 0.0
  %1657 = vmatpush2.msra.mxu0 0.0
  %1658 = vmatprep.subr.mxu0 0.0
  %1659 = vmatpush2.msra.mxu0 0.0
  %1660 = vmatprep.subr.mxu0 0.0
  %1661 = vmatpush2.msra.mxu0 0.0
  %1662 = vmatprep.subr.mxu0 0.0
  %1663 = vmatpush2.msra.mxu0 0.0
  %1664 = vmatprep.subr.mxu0 0.0
  %1665 = vmatpush2.msra.mxu0 0.0
  %1666 = vmatprep.subr.mxu0 0.0
  %1667 = vmatpush2.msra.mxu0 0.0
  %1668 = vmatprep.subr.mxu0 0.0
  %1669 = vmatpush2.msra.mxu0 0.0
  %1670 = vmatprep.subr.mxu0 0.0
  %1671 = vmatpush2.msra.mxu0 0.0
  %1672 = vmatprep.subr.mxu0 0.0
  %1673 = vmatpush2.msra.mxu0 0.0
  %1674 = vmatprep.subr.mxu0 0.0
  %1675 = vmatpush2.msra.mxu0 0.0
  %1676 = vmatprep.subr.mxu0 0.0
  %1677 = vmatpush2.msra.mxu0 0.0
  %1678 = vmatprep.subr.mxu0 0.0
  %1679 = vmatpush2.msra.mxu0 0.0
  %1680 = vmatprep.mubr.f32.mxu0 0.0
  %v1681 = vand.u32 %v33, 4294901760
  %v1682 = vsub.f32 %v33, %v1681
  %v1683 = vand.u32 %v1682, 4294901760
  %v1684 = vsub.f32 %v1682, %v1683
  %v1685 = vand.u32 %v1684, 4294901760
  %1686 = vmatmul.mubr.f32.gmra.mxu0 %v1685
  %v1687 = vpop.f32.mrf.mxu0
  %v1688 = vadd.f32 %v31, %v1687
  %v1689 = vpop.f32.mrf.mxu0
  %1690 = vdwg.mxu0
  %1691 = vmatprep.subr.mxu0 0.0
  %1692 = vmatpush1.msra.mxu0 0.0
  %1693 = vmatprep.subr.mxu0 0.0
  %1694 = vmatpush1.msra.mxu0 0.0
  %1695 = vmatprep.subr.mxu0 0.0
  %1696 = vmatpush1.msra.mxu0 0.0
  %1697 = vmatprep.subr.mxu0 0.0
  %1698 = vmatpush1.msra.mxu0 0.0
  %1699 = vmatprep.subr.mxu0 0.0
  %1700 = vmatpush1.msra.mxu0 0.0
  %1701 = vmatprep.subr.mxu0 0.0
  %1702 = vmatpush1.msra.mxu0 0.0
  %1703 = vmatprep.subr.mxu0 0.0
  %1704 = vmatpush1.msra.mxu0 0.0
  %1705 = vmatprep.subr.mxu0 0.0
  %1706 = vmatpush1.msra.mxu0 0.0
  %1707 = vmatprep.subr.mxu0 0.0
  %1708 = vmatpush1.msra.mxu0 0.0
  %1709 = vmatprep.subr.mxu0 0.0
  %1710 = vmatpush1.msra.mxu0 0.0
  %1711 = vmatprep.subr.mxu0 0.0
  %1712 = vmatpush1.msra.mxu0 0.0
  %1713 = vmatprep.subr.mxu0 0.0
  %1714 = vmatpush1.msra.mxu0 0.0
  %1715 = vmatprep.subr.mxu0 0.0
  %1716 = vmatpush1.msra.mxu0 0.0
  %1717 = vmatprep.subr.mxu0 0.0
  %1718 = vmatpush1.msra.mxu0 0.0
  %1719 = vmatprep.subr.mxu0 0.0
  %1720 = vmatpush1.msra.mxu0 0.0
  %1721 = vmatprep.subr.mxu0 0.0
  %v1722 = vand.u32 %v1614, 4294901760
  %v1723 = vsub.f32 %v1614, %v1722
  %v1724 = vand.u32 %v1723, 4294901760
  %v1725 = vsub.f32 %v1723, %v1724
  %v1726 = vand.u32 %v1725, 4294901760
  %1727 = vmatpush1.msra.mxu0 %v1726
  %1728 = vmatprep.subr.mxu0 0.0
  %1729 = vmatpush2.msra.mxu0 0.0
  %1730 = vmatprep.subr.mxu0 0.0
  %1731 = vmatpush2.msra.mxu0 0.0
  %1732 = vmatprep.subr.mxu0 0.0
  %1733 = vmatpush2.msra.mxu0 0.0
  %1734 = vmatprep.subr.mxu0 0.0
  %1735 = vmatpush2.msra.mxu0 0.0
  %1736 = vmatprep.subr.mxu0 0.0
  %1737 = vmatpush2.msra.mxu0 0.0
  %1738 = vmatprep.subr.mxu0 0.0
  %1739 = vmatpush2.msra.mxu0 0.0
  %1740 = vmatprep.subr.mxu0 0.0
  %1741 = vmatpush2.msra.mxu0 0.0
  %1742 = vmatprep.subr.mxu0 0.0
  %1743 = vmatpush2.msra.mxu0 0.0
  %1744 = vmatprep.subr.mxu0 0.0
  %1745 = vmatpush2.msra.mxu0 0.0
  %1746 = vmatprep.subr.mxu0 0.0
  %1747 = vmatpush2.msra.mxu0 0.0
  %1748 = vmatprep.subr.mxu0 0.0
  %1749 = vmatpush2.msra.mxu0 0.0
  %1750 = vmatprep.subr.mxu0 0.0
  %1751 = vmatpush2.msra.mxu0 0.0
  %1752 = vmatprep.subr.mxu0 0.0
  %1753 = vmatpush2.msra.mxu0 0.0
  %1754 = vmatprep.subr.mxu0 0.0
  %1755 = vmatpush2.msra.mxu0 0.0
  %1756 = vmatprep.subr.mxu0 0.0
  %1757 = vmatpush2.msra.mxu0 0.0
  %1758 = vmatprep.subr.mxu0 0.0
  %1759 = vmatpush2.msra.mxu0 0.0
  %1760 = vmatprep.mubr.f32.mxu0 0.0
  %v1761 = vand.u32 %v33, 4294901760
  %1762 = vmatmul.mubr.f32.gmra.mxu0 %v1761
  %v1763 = vpop.f32.mrf.mxu0
  %v1764 = vadd.f32 %v1688, %v1763
  %v1765 = vpop.f32.mrf.mxu0
  %1766 = vdwg.mxu0
  %1767 = vmatprep.subr.mxu0 0.0
  %1768 = vmatpush1.msra.mxu0 0.0
  %1769 = vmatprep.subr.mxu0 0.0
  %1770 = vmatpush1.msra.mxu0 0.0
  %1771 = vmatprep.subr.mxu0 0.0
  %1772 = vmatpush1.msra.mxu0 0.0
  %1773 = vmatprep.subr.mxu0 0.0
  %1774 = vmatpush1.msra.mxu0 0.0
  %1775 = vmatprep.subr.mxu0 0.0
  %1776 = vmatpush1.msra.mxu0 0.0
  %1777 = vmatprep.subr.mxu0 0.0
  %1778 = vmatpush1.msra.mxu0 0.0
  %1779 = vmatprep.subr.mxu0 0.0
  %1780 = vmatpush1.msra.mxu0 0.0
  %1781 = vmatprep.subr.mxu0 0.0
  %1782 = vmatpush1.msra.mxu0 0.0
  %1783 = vmatprep.subr.mxu0 0.0
  %1784 = vmatpush1.msra.mxu0 0.0
  %1785 = vmatprep.subr.mxu0 0.0
  %1786 = vmatpush1.msra.mxu0 0.0
  %1787 = vmatprep.subr.mxu0 0.0
  %1788 = vmatpush1.msra.mxu0 0.0
  %1789 = vmatprep.subr.mxu0 0.0
  %1790 = vmatpush1.msra.mxu0 0.0
  %1791 = vmatprep.subr.mxu0 0.0
  %1792 = vmatpush1.msra.mxu0 0.0
  %1793 = vmatprep.subr.mxu0 0.0
  %1794 = vmatpush1.msra.mxu0 0.0
  %1795 = vmatprep.subr.mxu0 0.0
  %1796 = vmatpush1.msra.mxu0 0.0
  %1797 = vmatprep.subr.mxu0 0.0
  %v1798 = vand.u32 %v1614, 4294901760
  %v1799 = vsub.f32 %v1614, %v1798
  %1800 = vmatpush1.msra.mxu0 %v1799
  %1801 = vmatprep.subr.mxu0 0.0
  %1802 = vmatpush2.msra.mxu0 0.0
  %1803 = vmatprep.subr.mxu0 0.0
  %1804 = vmatpush2.msra.mxu0 0.0
  %1805 = vmatprep.subr.mxu0 0.0
  %1806 = vmatpush2.msra.mxu0 0.0
  %1807 = vmatprep.subr.mxu0 0.0
  %1808 = vmatpush2.msra.mxu0 0.0
  %1809 = vmatprep.subr.mxu0 0.0
  %1810 = vmatpush2.msra.mxu0 0.0
  %1811 = vmatprep.subr.mxu0 0.0
  %1812 = vmatpush2.msra.mxu0 0.0
  %1813 = vmatprep.subr.mxu0 0.0
  %1814 = vmatpush2.msra.mxu0 0.0
  %1815 = vmatprep.subr.mxu0 0.0
  %1816 = vmatpush2.msra.mxu0 0.0
  %1817 = vmatprep.subr.mxu0 0.0
  %1818 = vmatpush2.msra.mxu0 0.0
  %1819 = vmatprep.subr.mxu0 0.0
  %1820 = vmatpush2.msra.mxu0 0.0
  %1821 = vmatprep.subr.mxu0 0.0
  %1822 = vmatpush2.msra.mxu0 0.0
  %1823 = vmatprep.subr.mxu0 0.0
  %1824 = vmatpush2.msra.mxu0 0.0
  %1825 = vmatprep.subr.mxu0 0.0
  %1826 = vmatpush2.msra.mxu0 0.0
  %1827 = vmatprep.subr.mxu0 0.0
  %1828 = vmatpush2.msra.mxu0 0.0
  %1829 = vmatprep.subr.mxu0 0.0
  %1830 = vmatpush2.msra.mxu0 0.0
  %1831 = vmatprep.subr.mxu0 0.0
  %1832 = vmatpush2.msra.mxu0 0.0
  %1833 = vmatprep.mubr.f32.mxu0 0.0
  %v1834 = vand.u32 %v33, 4294901760
  %v1835 = vsub.f32 %v33, %v1834
  %1836 = vmatmul.mubr.f32.gmra.mxu0 %v1835
  %v1837 = vpop.f32.mrf.mxu0
  %v1838 = vadd.f32 %v1764, %v1837
  %v1839 = vpop.f32.mrf.mxu0
  %1840 = vdwg.mxu0
  %1841 = vmatprep.subr.mxu0 0.0
  %1842 = vmatpush1.msra.mxu0 0.0
  %1843 = vmatprep.subr.mxu0 0.0
  %1844 = vmatpush1.msra.mxu0 0.0
  %1845 = vmatprep.subr.mxu0 0.0
  %1846 = vmatpush1.msra.mxu0 0.0
  %1847 = vmatprep.subr.mxu0 0.0
  %1848 = vmatpush1.msra.mxu0 0.0
  %1849 = vmatprep.subr.mxu0 0.0
  %1850 = vmatpush1.msra.mxu0 0.0
  %1851 = vmatprep.subr.mxu0 0.0
  %1852 = vmatpush1.msra.mxu0 0.0
  %1853 = vmatprep.subr.mxu0 0.0
  %1854 = vmatpush1.msra.mxu0 0.0
  %1855 = vmatprep.subr.mxu0 0.0
  %1856 = vmatpush1.msra.mxu0 0.0
  %1857 = vmatprep.subr.mxu0 0.0
  %1858 = vmatpush1.msra.mxu0 0.0
  %1859 = vmatprep.subr.mxu0 0.0
  %1860 = vmatpush1.msra.mxu0 0.0
  %1861 = vmatprep.subr.mxu0 0.0
  %1862 = vmatpush1.msra.mxu0 0.0
  %1863 = vmatprep.subr.mxu0 0.0
  %1864 = vmatpush1.msra.mxu0 0.0
  %1865 = vmatprep.subr.mxu0 0.0
  %1866 = vmatpush1.msra.mxu0 0.0
  %1867 = vmatprep.subr.mxu0 0.0
  %1868 = vmatpush1.msra.mxu0 0.0
  %1869 = vmatprep.subr.mxu0 0.0
  %1870 = vmatpush1.msra.mxu0 0.0
  %1871 = vmatprep.subr.mxu0 0.0
  %v1872 = vand.u32 %v1614, 4294901760
  %1873 = vmatpush1.msra.mxu0 %v1872
  %1874 = vmatprep.subr.mxu0 0.0
  %1875 = vmatpush2.msra.mxu0 0.0
  %1876 = vmatprep.subr.mxu0 0.0
  %1877 = vmatpush2.msra.mxu0 0.0
  %1878 = vmatprep.subr.mxu0 0.0
  %1879 = vmatpush2.msra.mxu0 0.0
  %1880 = vmatprep.subr.mxu0 0.0
  %1881 = vmatpush2.msra.mxu0 0.0
  %1882 = vmatprep.subr.mxu0 0.0
  %1883 = vmatpush2.msra.mxu0 0.0
  %1884 = vmatprep.subr.mxu0 0.0
  %1885 = vmatpush2.msra.mxu0 0.0
  %1886 = vmatprep.subr.mxu0 0.0
  %1887 = vmatpush2.msra.mxu0 0.0
  %1888 = vmatprep.subr.mxu0 0.0
  %1889 = vmatpush2.msra.mxu0 0.0
  %1890 = vmatprep.subr.mxu0 0.0
  %1891 = vmatpush2.msra.mxu0 0.0
  %1892 = vmatprep.subr.mxu0 0.0
  %1893 = vmatpush2.msra.mxu0 0.0
  %1894 = vmatprep.subr.mxu0 0.0
  %1895 = vmatpush2.msra.mxu0 0.0
  %1896 = vmatprep.subr.mxu0 0.0
  %1897 = vmatpush2.msra.mxu0 0.0
  %1898 = vmatprep.subr.mxu0 0.0
  %1899 = vmatpush2.msra.mxu0 0.0
  %1900 = vmatprep.subr.mxu0 0.0
  %1901 = vmatpush2.msra.mxu0 0.0
  %1902 = vmatprep.subr.mxu0 0.0
  %1903 = vmatpush2.msra.mxu0 0.0
  %1904 = vmatprep.subr.mxu0 0.0
  %1905 = vmatpush2.msra.mxu0 0.0
  %1906 = vmatprep.mubr.f32.mxu0 0.0
  %v1907 = vand.u32 %v33, 4294901760
  %v1908 = vsub.f32 %v33, %v1907
  %v1909 = vand.u32 %v1908, 4294901760
  %1910 = vmatmul.mubr.f32.gmra.mxu0 %v1909
  %v1911 = vpop.f32.mrf.mxu0
  %v1912 = vadd.f32 %v1838, %v1911
  %v1913 = vpop.f32.mrf.mxu0
  %1914 = vdwg.mxu0
  %1915 = vmatprep.subr.mxu0 0.0
  %1916 = vmatpush1.msra.mxu0 0.0
  %1917 = vmatprep.subr.mxu0 0.0
  %1918 = vmatpush1.msra.mxu0 0.0
  %1919 = vmatprep.subr.mxu0 0.0
  %1920 = vmatpush1.msra.mxu0 0.0
  %1921 = vmatprep.subr.mxu0 0.0
  %1922 = vmatpush1.msra.mxu0 0.0
  %1923 = vmatprep.subr.mxu0 0.0
  %1924 = vmatpush1.msra.mxu0 0.0
  %1925 = vmatprep.subr.mxu0 0.0
  %1926 = vmatpush1.msra.mxu0 0.0
  %1927 = vmatprep.subr.mxu0 0.0
  %1928 = vmatpush1.msra.mxu0 0.0
  %1929 = vmatprep.subr.mxu0 0.0
  %1930 = vmatpush1.msra.mxu0 0.0
  %1931 = vmatprep.subr.mxu0 0.0
  %1932 = vmatpush1.msra.mxu0 0.0
  %1933 = vmatprep.subr.mxu0 0.0
  %1934 = vmatpush1.msra.mxu0 0.0
  %1935 = vmatprep.subr.mxu0 0.0
  %1936 = vmatpush1.msra.mxu0 0.0
  %1937 = vmatprep.subr.mxu0 0.0
  %1938 = vmatpush1.msra.mxu0 0.0
  %1939 = vmatprep.subr.mxu0 0.0
  %1940 = vmatpush1.msra.mxu0 0.0
  %1941 = vmatprep.subr.mxu0 0.0
  %1942 = vmatpush1.msra.mxu0 0.0
  %1943 = vmatprep.subr.mxu0 0.0
  %1944 = vmatpush1.msra.mxu0 0.0
  %1945 = vmatprep.subr.mxu0 0.0
  %v1946 = vand.u32 %v1614, 4294901760
  %v1947 = vsub.f32 %v1614, %v1946
  %v1948 = vand.u32 %v1947, 4294901760
  %1949 = vmatpush1.msra.mxu0 %v1948
  %1950 = vmatprep.subr.mxu0 0.0
  %1951 = vmatpush2.msra.mxu0 0.0
  %1952 = vmatprep.subr.mxu0 0.0
  %1953 = vmatpush2.msra.mxu0 0.0
  %1954 = vmatprep.subr.mxu0 0.0
  %1955 = vmatpush2.msra.mxu0 0.0
  %1956 = vmatprep.subr.mxu0 0.0
  %1957 = vmatpush2.msra.mxu0 0.0
  %1958 = vmatprep.subr.mxu0 0.0
  %1959 = vmatpush2.msra.mxu0 0.0
  %1960 = vmatprep.subr.mxu0 0.0
  %1961 = vmatpush2.msra.mxu0 0.0
  %1962 = vmatprep.subr.mxu0 0.0
  %1963 = vmatpush2.msra.mxu0 0.0
  %1964 = vmatprep.subr.mxu0 0.0
  %1965 = vmatpush2.msra.mxu0 0.0
  %1966 = vmatprep.subr.mxu0 0.0
  %1967 = vmatpush2.msra.mxu0 0.0
  %1968 = vmatprep.subr.mxu0 0.0
  %1969 = vmatpush2.msra.mxu0 0.0
  %1970 = vmatprep.subr.mxu0 0.0
  %1971 = vmatpush2.msra.mxu0 0.0
  %1972 = vmatprep.subr.mxu0 0.0
  %1973 = vmatpush2.msra.mxu0 0.0
  %1974 = vmatprep.subr.mxu0 0.0
  %1975 = vmatpush2.msra.mxu0 0.0
  %1976 = vmatprep.subr.mxu0 0.0
  %1977 = vmatpush2.msra.mxu0 0.0
  %1978 = vmatprep.subr.mxu0 0.0
  %1979 = vmatpush2.msra.mxu0 0.0
  %1980 = vmatprep.subr.mxu0 0.0
  %1981 = vmatpush2.msra.mxu0 0.0
  %1982 = vmatprep.mubr.f32.mxu0 0.0
  %v1983 = vand.u32 %v33, 4294901760
  %1984 = vmatmul.mubr.f32.gmra.mxu0 %v1983
  %v1985 = vpop.f32.mrf.mxu0
  %v1986 = vadd.f32 %v1912, %v1985
  %v1987 = vpop.f32.mrf.mxu0
  %1988 = vdwg.mxu0
  %1989 = vmatprep.subr.mxu0 0.0
  %1990 = vmatpush1.msra.mxu0 0.0
  %1991 = vmatprep.subr.mxu0 0.0
  %1992 = vmatpush1.msra.mxu0 0.0
  %1993 = vmatprep.subr.mxu0 0.0
  %1994 = vmatpush1.msra.mxu0 0.0
  %1995 = vmatprep.subr.mxu0 0.0
  %1996 = vmatpush1.msra.mxu0 0.0
  %1997 = vmatprep.subr.mxu0 0.0
  %1998 = vmatpush1.msra.mxu0 0.0
  %1999 = vmatprep.subr.mxu0 0.0
  %2000 = vmatpush1.msra.mxu0 0.0
  %2001 = vmatprep.subr.mxu0 0.0
  %2002 = vmatpush1.msra.mxu0 0.0
  %2003 = vmatprep.subr.mxu0 0.0
  %2004 = vmatpush1.msra.mxu0 0.0
  %2005 = vmatprep.subr.mxu0 0.0
  %2006 = vmatpush1.msra.mxu0 0.0
  %2007 = vmatprep.subr.mxu0 0.0
  %2008 = vmatpush1.msra.mxu0 0.0
  %2009 = vmatprep.subr.mxu0 0.0
  %2010 = vmatpush1.msra.mxu0 0.0
  %2011 = vmatprep.subr.mxu0 0.0
  %2012 = vmatpush1.msra.mxu0 0.0
  %2013 = vmatprep.subr.mxu0 0.0
  %2014 = vmatpush1.msra.mxu0 0.0
  %2015 = vmatprep.subr.mxu0 0.0
  %2016 = vmatpush1.msra.mxu0 0.0
  %2017 = vmatprep.subr.mxu0 0.0
  %2018 = vmatpush1.msra.mxu0 0.0
  %2019 = vmatprep.subr.mxu0 0.0
  %v2020 = vand.u32 %v1614, 4294901760
  %2021 = vmatpush1.msra.mxu0 %v2020
  %2022 = vmatprep.subr.mxu0 0.0
  %2023 = vmatpush2.msra.mxu0 0.0
  %2024 = vmatprep.subr.mxu0 0.0
  %2025 = vmatpush2.msra.mxu0 0.0
  %2026 = vmatprep.subr.mxu0 0.0
  %2027 = vmatpush2.msra.mxu0 0.0
  %2028 = vmatprep.subr.mxu0 0.0
  %2029 = vmatpush2.msra.mxu0 0.0
  %2030 = vmatprep.subr.mxu0 0.0
  %2031 = vmatpush2.msra.mxu0 0.0
  %2032 = vmatprep.subr.mxu0 0.0
  %2033 = vmatpush2.msra.mxu0 0.0
  %2034 = vmatprep.subr.mxu0 0.0
  %2035 = vmatpush2.msra.mxu0 0.0
  %2036 = vmatprep.subr.mxu0 0.0
  %2037 = vmatpush2.msra.mxu0 0.0
  %2038 = vmatprep.subr.mxu0 0.0
  %2039 = vmatpush2.msra.mxu0 0.0
  %2040 = vmatprep.subr.mxu0 0.0
  %2041 = vmatpush2.msra.mxu0 0.0
  %2042 = vmatprep.subr.mxu0 0.0
  %2043 = vmatpush2.msra.mxu0 0.0
  %2044 = vmatprep.subr.mxu0 0.0
  %2045 = vmatpush2.msra.mxu0 0.0
  %2046 = vmatprep.subr.mxu0 0.0
  %2047 = vmatpush2.msra.mxu0 0.0
  %2048 = vmatprep.subr.mxu0 0.0
  %2049 = vmatpush2.msra.mxu0 0.0
  %2050 = vmatprep.subr.mxu0 0.0
  %2051 = vmatpush2.msra.mxu0 0.0
  %2052 = vmatprep.subr.mxu0 0.0
  %2053 = vmatpush2.msra.mxu0 0.0
  %2054 = vmatprep.mubr.f32.mxu0 0.0
  %v2055 = vand.u32 %v33, 4294901760
  %2056 = vmatmul.mubr.f32.gmra.mxu0 %v2055
  %v2057 = vpop.f32.mrf.mxu0
  %v2058 = vadd.f32 %v1986, %v2057
  %v2059 = vpop.f32.mrf.mxu0
  %2060 = vdwg.mxu0
  %2061 = vadd.xlane.f32.xlu0 %v2058
  %v2062 = vpop.xlane.xlu0 %2061
  %v2063 = vmul.f32 %v2062, 0.055555556
  %v2064 = vmul.f32 %v2058, %v2058
  %2065 = vadd.xlane.f32.xlu0 %v2064
  %v2066 = vpop.xlane.xlu0 %2065
  %v2067 = vmul.f32 %v2066, 0.055555556
  %v2068 = vmul.f32 %v2063, %v2063
  %v2069 = vsub.f32 %v2067, %v2068
  %v2070 = vadd.f32 %v2069, 1e-05
  %v2071 = vrsqrt.pop %v2070
  %v2072 = vmul.f32 %v1609, %v30
  %2073 = vadd.xlane.f32.xlu0 %v2072
  %v2074 = vpop.xlane.xlu0 %2073
  %v2075 = vmul.f32 %v2074, 0.055555556
  %v2076 = vmul.f32 %v2072, %v2072
  %2077 = vadd.xlane.f32.xlu0 %v2076
  %v2078 = vpop.xlane.xlu0 %2077
  %v2079 = vmul.f32 %v2078, 0.055555556
  %v2080 = vmul.f32 %v2075, %v2075
  %v2081 = vsub.f32 %v2079, %v2080
  %v2082 = vadd.f32 %v2081, 1e-05
  %v2083 = vrsqrt.pop %v2082
  %v2084 = vsub.f32 %v2058, %v2063
  %v2085 = vmul.f32 %v2084, %v2071
  %v2086 = vsub.f32 %v1609, %v2075
  %v2087 = vmul.f32 %v2086, %v2083
  %v2088 = vadd.f32 %v2085, %v2087
  %2089 = vst [vmem:[%s3] sm:$0xff] %v2088
  // Predicated region
  $region14: #{forward.1} parent=0 // pred_check
    _
  $region15: #{forward.1} parent=0 // pred_check_branch
    %2091 = sbr.rel (0) target = $region17
  $region16: #{forward.1} parent=0 // pred_region
    _
  $region17: #{forward.1} parent=0 // pred_fallthru
    _
  // Predicated region
  $region18: #{forward.1} parent=0 // pred_check
    _
  $region19: #{forward.1} parent=0 // pred_check_branch
    %2093 = sbr.rel (0) target = $region21
  $region20: #{forward.1} parent=0 // pred_region
    _
  $region21: #{forward.1} parent=0 // pred_fallthru
    _

</llo_original>
